<compile_context>
chip_gen: v7x
topology: tpu7x:2x2x1
jax: 0.10.0
libtpu: 0.0.40
codegen_flags: <defaults>
</compile_context>

<pallas_src>
import functools

import jax
import jax.numpy as jnp
from jax import lax
from jax.experimental import pallas as pl
from jax.experimental.pallas import tpu as pltpu

BF16 = jnp.bfloat16
F32 = jnp.float32


# ----------------------------------------------------------------------------
# Fused forward kernel
# ----------------------------------------------------------------------------
def _fused_forward_kernel(
    e_unf_ref,    # (K, N_in*B, C1)     bf16  host-precomputed tanh(embed) windows
    ys_gT_ref,    # (V_out, N_out*B)    bf16  one-hot targets, flat+transposed
    bmask_ref,    # (N_in*B, N_out*B)   f32   block-diag batch-match mask (1/0)
    w_conv_ref,   # (K, C1, C2)         bf16
    b_conv_ref,   # (1, C2)             f32
    w_dec_ref,    # (C2, V_out)         bf16
    b_dec_ref,    # (1, V_out)          f32
    gx_enc_ref,   # (N_in, 2B, 4H)      f32   fused-gate input proj (+bias), fwd|rev
    whh_enc_ref,  # (H, 4H)             bf16  native fused recurrent weights
    gx_dec_ref,   # (N_out-1, B, 4H)    f32
    whh_dec_ref,  # (H, 4H)             bf16
    t1_ref,       # (H, H)              bf16  = T[:, :H].T
    t2_ref,       # (H, H)              bf16  = T[:, H:].T
    loss_ref,     # (1, 1)              f32   output
    hf_ref,       # (N_in*B, H)         f32   scratch: fwd encoder states (t-major)
    hb_ref,       # (N_in*B, H)         f32   scratch: bwd encoder states (un-flipped)
    hd_ref,       # (N_out*B, H)        f32   scratch: shifted decoder states
):
    K, NB_in, _ = e_unf_ref.shape
    C2 = w_conv_ref.shape[2]
    NB_out = ys_gT_ref.shape[1]
    H, H4 = whh_enc_ref.shape
    N_in, B2, _ = gx_enc_ref.shape
    B = B2 // 2
    N_dec = gx_dec_ref.shape[0]

    # ------------- G-equivariant stack: conv -> tanh -> decode -> softmax ---
    # (embedding + tanh were folded on the host; padded rows are exact zeros)
    acc = jnp.zeros((NB_in, C2), F32)
    for k in range(K):                       # static K-tap loop, aligned loads
        acc = acc + jnp.dot(e_unf_ref[k], w_conv_ref[k],
                            preferred_element_type=F32)
    h_conv = jnp.tanh(acc + b_conv_ref[...])
    logits = jnp.dot(h_conv.astype(BF16), w_dec_ref[...],
                     preferred_element_type=F32) + b_dec_ref[...]
    mx = jnp.max(logits, axis=-1, keepdims=True)
    ex = jnp.exp(logits - mx)
    probs = ex * pl.reciprocal(jnp.sum(ex, axis=-1, keepdims=True),
                               approx=True)                 # (N_in*B, V_out) f32

    # ------------- fused-gate LSTM step (one (rows,H)@(H,4H) matmul) --------
    def make_gmask(rows):                     # lanes [2H,3H) are the 'g' gate
        lane = lax.broadcasted_iota(jnp.int32, (rows, H4), 1)
        return (lane >= 2 * H) & (lane < 3 * H)

    def lstm_step(gx, h, c, whh, gmask):
        z = gx + jnp.dot(h.astype(BF16), whh, preferred_element_type=F32)
        act = jnp.where(gmask, jnp.tanh(z), jax.nn.sigmoid(z))   # whole-row EUP
        i_g = act[:, 0:H]
        f_g = act[:, H:2 * H]
        g_g = act[:, 2 * H:3 * H]
        o_g = act[:, 3 * H:]
        c_n = f_g * c + i_g * g_g
        h_n = o_g * jnp.tanh(c_n)
        return h_n, c_n

    # ------------- fused bidirectional encoder (rows 0:B fwd, B:2B reversed) -
    whh_e = whh_enc_ref[...]
    gmask_e = make_gmask(B2)

    def enc_step(t, carry):
        h, c = carry
        h_n, c_n = lstm_step(gx_enc_ref[t], h, c, whh_e, gmask_e)
        hf_ref[pl.ds(t * B, B), :] = h_n[:B]                 # fwd, natural order
        hb_ref[pl.ds((N_in - 1 - t) * B, B), :] = h_n[B:]    # bwd, un-flipped
        return h_n, c_n

    h_fin, c_fin = lax.fori_loop(
        0, N_in, enc_step,
        (jnp.zeros((B2, H), F32), jnp.zeros((B2, H), F32)),
        unroll=True)

    # ------------- decoder LSTM seeded with forward-encoder final state ------
    # h_dec row j==0 = last forward encoder state; row j>0 = decoder output j-1
    # (the model drops the last decoder output, so only N_out-1 steps are run).
    whh_d = whh_dec_ref[...]
    gmask_d = make_gmask(B)
    hd_ref[0:B, :] = h_fin[:B]

    def dec_step(t, carry):
        h, c = carry
        h_n, c_n = lstm_step(gx_dec_ref[t], h, c, whh_d, gmask_d)
        hd_ref[pl.ds((t + 1) * B, B), :] = h_n
        return h_n, c_n

    lax.fori_loop(0, N_dec, dec_step, (h_fin[:B], c_fin[:B]), unroll=True)

    # ------------- batched bilinear attention + hard-alignment NLL ----------
    # Flat "time-major" layout: row p = i*B + b, col q = j*B + b'. The batch
    # restriction (b == b') is a host-built block-diagonal mask, so every op
    # below is a plain 2D matmul / reduction covering all batches at once.
    hf = hf_ref[...].astype(BF16)
    hb = hb_ref[...].astype(BF16)
    hd = hd_ref[...].astype(BF16)

    # Th[p] = T @ [h_fwd[p]; h_bwd[p]]  (split form, no concat)
    th = (jnp.dot(hf, t1_ref[...], preferred_element_type=F32)
          + jnp.dot(hb, t2_ref[...], preferred_element_type=F32))  # (N_in*B, H)

    # eij[p, q] = <Th[p], h_dec[q]>
    eij = lax.dot_general(th.astype(BF16), hd,
                          dimension_numbers=(((1,), (1,)), ((), ())),
                          preferred_element_type=F32)       # (N_in*B, N_out*B)

    match = bmask_ref[...] > 0.5
    eij_m = jnp.where(match, eij, jnp.float32(-1e30))
    m = jnp.max(eij_m, axis=0, keepdims=True)
    ez = jnp.exp(eij_m - m)                                  # 0 where b != b'
    align = ez * pl.reciprocal(jnp.sum(ez, axis=0, keepdims=True), approx=True)

    # gather(probs, target tokens) == probs @ onehot(ys)^T  (one-hot exact in bf16)
    enc_sc = jnp.dot(probs.astype(BF16), ys_gT_ref[...],
                     preferred_element_type=F32)             # (N_in*B, N_out*B)

    scores = enc_sc * align                                  # cross-batch terms == 0
    total = jnp.sum(jnp.log(jnp.sum(scores, axis=0, keepdims=True)))
    loss_ref[...] = jnp.reshape(-total, (1, 1))


# ----------------------------------------------------------------------------
# Host wrapper: layout plumbing + weight folding, then one pallas_call
# ----------------------------------------------------------------------------
def forward(params, xs, ys, p_G, K):
    # xs: (B, N_in, V_in, 1) one-hot, ys: (B, N_out, V_out, 1) one-hot
    xs_oh = jnp.squeeze(xs, axis=-1).astype(F32)
    ys_oh = jnp.squeeze(ys, axis=-1).astype(F32)
    B, N_in, V_in = xs_oh.shape
    N_out, V_out = ys_oh.shape[1], ys_oh.shape[2]
    H = params["T"].shape[0]
    pad = K // 2

    # ---- gstack embedding folded on the host: e = tanh(onehot @ W_emb) over
    #      the padded sequence (padded rows are exact zeros, no embed bias),
    #      then unfolded into K conv windows, flattened TIME-MAJOR (p = i*B+b).
    xpad = jnp.pad(xs_oh, ((0, 0), (pad, pad), (0, 0)))
    emb = jnp.tanh(jnp.einsum("bnv,vc->bnc", xpad, params["w_emb"]))
    e_unf = jnp.stack(
        [jnp.transpose(emb[:, k:k + N_in, :], (1, 0, 2)).reshape(N_in * B, -1)
         for k in range(K)], axis=0).astype(BF16)             # (K, N_in*B, C1)

    # ---- targets: one-hot flattened q = j*B + b, transposed for the gather
    ys_flat = jnp.transpose(ys_oh, (1, 0, 2)).reshape(N_out * B, V_out)
    ys_gT = jnp.transpose(ys_flat, (1, 0)).astype(BF16)       # (V_out, N_out*B)

    # ---- block-diagonal batch-match mask for the flat attention layout
    p_b = jnp.arange(N_in * B) % B
    q_b = jnp.arange(N_out * B) % B
    bmask = (p_b[:, None] == q_b[None, :]).astype(F32)        # (N_in*B, N_out*B)

    # ---- masked embeddings (token idx < len(G) -> idx 0), folded into the
    #      FUSED-GATE LSTM input projections (native (in, 4H) layout).
    enc_emb_m = params["enc_embed"].at[:p_G, :].set(params["enc_embed"][0, :])
    dec_emb_m = params["dec_embed"].at[:p_G, :].set(params["dec_embed"][0, :])
    enc_win = enc_emb_m @ params["enc_wih"]                   # (V_in, 4H)
    dec_win = dec_emb_m @ params["dec_wih"]                   # (V_out, 4H)

    # ---- fused bidirectional batch: rows [0:B] forward, [B:2B] time-reversed.
    xs_tm = jnp.transpose(xs_oh, (1, 0, 2))                   # (N_in, B, V_in)
    x_bi = jnp.concatenate([xs_tm, xs_tm[::-1]], axis=1)      # (N_in, 2B, V_in)
    ys_tm = jnp.transpose(ys_oh, (1, 0, 2))                   # (N_out, B, V_out)

    # fused-gate input projections (+ bias), lane-dense (N, rows, 4H)
    gx_enc = jnp.einsum("tbv,vh->tbh", x_bi, enc_win) + params["enc_b"]
    gx_dec = (jnp.einsum("tbv,vh->tbh", ys_tm, dec_win)
              + params["dec_b"])[:N_out - 1]                  # last step unused

    t1 = params["T"][:, :H].T.astype(BF16)                    # (H, H)
    t2 = params["T"][:, H:].T.astype(BF16)

    vmem = pl.BlockSpec(memory_space=pltpu.MemorySpace.VMEM)
    loss = pl.pallas_call(
        _fused_forward_kernel,
        out_shape=jax.ShapeDtypeStruct((1, 1), F32),
        in_specs=[vmem] * 13,
        out_specs=vmem,
        scratch_shapes=[
            pltpu.VMEM((N_in * B, H), F32),    # forward encoder states
            pltpu.VMEM((N_in * B, H), F32),    # backward encoder states
            pltpu.VMEM((N_out * B, H), F32),   # shifted decoder states
        ],
    )(e_unf, ys_gT, bmask,
      params["w_conv"].astype(BF16), params["b_conv"],
      params["w_dec"].astype(BF16), params["b_dec"],
      gx_enc, params["enc_whh"].astype(BF16),
      gx_dec, params["dec_whh"].astype(BF16),
      t1, t2)
    return loss[0, 0]


# ----------------------------------------------------------------------------
# Pure-JAX (f32) reference of the module's forward(), for a sanity check
# ----------------------------------------------------------------------------
def reference_forward(params, xs, ys, p_G, K):
    xs_oh = jnp.squeeze(xs, -1).astype(F32)
    ys_oh = jnp.squeeze(ys, -1).astype(F32)
    B, N_in, _ = xs_oh.shape
    N_out = ys_oh.shape[1]
    H = params["T"].shape[0]
    pad = K // 2

    xpad = jnp.pad(xs_oh, ((0, 0), (pad, pad), (0, 0)))
    e = jnp.tanh(jnp.einsum("bnv,vc->bnc", xpad, params["w_emb"]))
    conv = sum(jnp.einsum("bnc,cd->bnd", e[:, k:k + N_in, :], params["w_conv"][k])
               for k in range(K))
    h = jnp.tanh(conv + params["b_conv"])
    logits = jnp.einsum("bnc,cv->bnv", h, params["w_dec"]) + params["b_dec"]
    probs = jax.nn.softmax(logits, axis=-1)
    ys_idx = jnp.argmax(ys_oh, axis=-1)
    enc_scores = jnp.take_along_axis(
        probs, jnp.broadcast_to(ys_idx[:, None, :], (B, N_in, N_out)), axis=2)

    xs_idx = jnp.argmax(xs_oh, -1)
    xs_idx = jnp.where(xs_idx < p_G, 0, xs_idx)
    ys_idx_m = jnp.where(ys_idx < p_G, 0, ys_idx)
    x_emb = params["enc_embed"][xs_idx]
    y_emb = params["dec_embed"][ys_idx_m]

    def lstm(xseq, h0, c0, wih, whh, b):
        def step(carry, x_t):
            hh, cc = carry
            g = x_t @ wih + hh @ whh + b
            i = jax.nn.sigmoid(g[:, :H]); f = jax.nn.sigmoid(g[:, H:2 * H])
            gg = jnp.tanh(g[:, 2 * H:3 * H]); o = jax.nn.sigmoid(g[:, 3 * H:])
            cc = f * cc + i * gg
            hh = o * jnp.tanh(cc)
            return (hh, cc), hh
        (hT, cT), hs = lax.scan(step, (h0, c0), jnp.swapaxes(xseq, 0, 1))
        return jnp.swapaxes(hs, 0, 1), hT, cT

    z = jnp.zeros((B, H), F32)
    henc, hN, cN = lstm(x_emb, z, z, params["enc_wih"], params["enc_whh"], params["enc_b"])
    hback, _, _ = lstm(x_emb[:, ::-1, :], z, z,
                       params["enc_wih"], params["enc_whh"], params["enc_b"])
    hback = hback[:, ::-1, :]
    dec_out, _, _ = lstm(y_emb, hN, cN,
                         params["dec_wih"], params["dec_whh"], params["dec_b"])

    h_dec = jnp.concatenate([henc[:, -1:, :], dec_out[:, :-1, :]], axis=1)
    h_enc = jnp.concatenate([henc, hback], axis=2)
    Th = jnp.einsum("bik,hk->bih", h_enc, params["T"])
    eij = jnp.einsum("bih,bjh->bij", Th, h_dec)
    align = jax.nn.softmax(eij, axis=1)
    p = jnp.sum(jnp.log(jnp.sum(enc_scores * align, axis=1)), axis=1)
    return -jnp.sum(p)


# ----------------------------------------------------------------------------
def init_params(key, V_in, V_out, p_G, K, num_filters, H, E, Ed):
    C1 = p_G * K
    C2 = p_G * num_filters
    ks = jax.random.split(key, 12)
    s = 0.1
    return {
        "w_emb": s * jax.random.normal(ks[0], (V_in, C1), F32),
        "w_conv": s * jax.random.normal(ks[1], (K, C1, C2), F32),
        "b_conv": s * jax.random.normal(ks[2], (1, C2), F32),
        "w_dec": s * jax.random.normal(ks[3], (C2, V_out), F32),
        "b_dec": s * jax.random.normal(ks[4], (1, V_out), F32),
        "enc_embed": s * jax.random.normal(ks[5], (V_in, E), F32),
        "dec_embed": s * jax.random.normal(ks[6], (V_out, Ed), F32),
        "enc_wih": s * jax.random.normal(ks[7], (E, 4 * H), F32),
        "enc_whh": s * jax.random.normal(ks[8], (H, 4 * H), F32),
        "enc_b": jnp.zeros((1, 4 * H), F32),   # == torch b_ih + b_hh summed
        "dec_wih": s * jax.random.normal(ks[9], (Ed, 4 * H), F32),
        "dec_whh": s * jax.random.normal(ks[10], (H, 4 * H), F32),
        "dec_b": jnp.zeros((1, 4 * H), F32),
        "T": jax.random.uniform(ks[11], (H, 2 * H), F32, -0.5, 0.5),
    }


if __name__ == "__main__":
    # small, module-consistent shapes
    B, N_in, N_out = 2, 8, 6
    V_in, V_out = 12, 12
    p_G, K, num_filters = 2, 3, 8          # len(G)=2, conv width K=3
    H, E, Ed = 32, 16, 16                  # hidden, encode/decode embed dims

    key = jax.random.PRNGKey(0)
    kp, kx, ky = jax.random.split(key, 3)
    params = init_params(kp, V_in, V_out, p_G, K, num_filters, H, E, Ed)

    xs_idx = jax.random.randint(kx, (B, N_in), 0, V_in)
    ys_idx = jax.random.randint(ky, (B, N_out), 0, V_out)
    xs = jax.nn.one_hot(xs_idx, V_in, dtype=F32)[..., None]    # (B, N_in, V_in, 1)
    ys = jax.nn.one_hot(ys_idx, V_out, dtype=F32)[..., None]   # (B, N_out, V_out, 1)

    loss_fn = jax.jit(functools.partial(forward, p_G=p_G, K=K))
    loss = loss_fn(params, xs, ys)
    loss = jax.block_until_ready(loss)

    ref = jax.block_until_ready(reference_forward(params, xs, ys, p_G, K))

    assert loss.shape == () and bool(jnp.isfinite(loss)), loss
    # bf16 matmul inputs + approx reciprocals in the kernel vs f32 reference
    assert abs(float(loss) - float(ref)) <= 0.05 * abs(float(ref)) + 0.05, \
        (float(loss), float(ref))
    print("KERNEL_OK")
</pallas_src>

<mosaic_0001>
module attributes {stable_mosaic.version = 11 : i64} {
  func.func @_fused_forward_kernel(%arg0: memref<3x16x6xbf16, #tpu.memory_space<vmem>>, %arg1: memref<12x12xbf16, #tpu.memory_space<vmem>>, %arg2: memref<16x12xf32, #tpu.memory_space<vmem>>, %arg3: memref<3x6x16xbf16, #tpu.memory_space<vmem>>, %arg4: memref<1x16xf32, #tpu.memory_space<vmem>>, %arg5: memref<16x12xbf16, #tpu.memory_space<vmem>>, %arg6: memref<1x12xf32, #tpu.memory_space<vmem>>, %arg7: memref<8x4x128xf32, #tpu.memory_space<vmem>>, %arg8: memref<32x128xbf16, #tpu.memory_space<vmem>>, %arg9: memref<5x2x128xf32, #tpu.memory_space<vmem>>, %arg10: memref<32x128xbf16, #tpu.memory_space<vmem>>, %arg11: memref<32x32xbf16, #tpu.memory_space<vmem>>, %arg12: memref<32x32xbf16, #tpu.memory_space<vmem>>, %arg13: memref<1x1xf32, #tpu.memory_space<vmem>>, %arg14: memref<16x32xf32, #tpu.memory_space<vmem>>, %arg15: memref<16x32xf32, #tpu.memory_space<vmem>>, %arg16: memref<12x32xf32, #tpu.memory_space<vmem>>) attributes {dimension_semantics = [], scalar_prefetch = 0 : i64, scratch_operands = 3 : i64, tpu.core_type = #tpu.core_type<tc>} {
    %cst = arith.constant 0.000000e+00 : f32
    %0 = vector.broadcast %cst : f32 to vector<16x16xf32>
    %c0 = arith.constant 0 : index
    %c0_0 = arith.constant 0 : index
    %c0_1 = arith.constant 0 : index
    %1 = vector.load %arg0[%c0, %c0_0, %c0_1] : memref<3x16x6xbf16, #tpu.memory_space<vmem>>, vector<1x16x6xbf16>
    %2 = vector.shape_cast %1 : vector<1x16x6xbf16> to vector<16x6xbf16>
    %c0_2 = arith.constant 0 : index
    %c0_3 = arith.constant 0 : index
    %c0_4 = arith.constant 0 : index
    %3 = vector.load %arg3[%c0_2, %c0_3, %c0_4] : memref<3x6x16xbf16, #tpu.memory_space<vmem>>, vector<1x6x16xbf16>
    %4 = vector.shape_cast %3 : vector<1x6x16xbf16> to vector<6x16xbf16>
    %cst_5 = arith.constant dense<0.000000e+00> : vector<16x16xf32>
    %5 = tpu.matmul %2, %4, %cst_5 {dimension_numbers = #tpu.dot_dimension_numbers<[1], [0], [0], [1], [0, 0, 1, 1], [], []>} : vector<16x6xbf16>, vector<6x16xbf16>, vector<16x16xf32> -> vector<16x16xf32>
    %6 = arith.addf %0, %5 : vector<16x16xf32>
    %c1 = arith.constant 1 : index
    %c0_6 = arith.constant 0 : index
    %c0_7 = arith.constant 0 : index
    %7 = vector.load %arg0[%c1, %c0_6, %c0_7] : memref<3x16x6xbf16, #tpu.memory_space<vmem>>, vector<1x16x6xbf16>
    %8 = vector.shape_cast %7 : vector<1x16x6xbf16> to vector<16x6xbf16>
    %c1_8 = arith.constant 1 : index
    %c0_9 = arith.constant 0 : index
    %c0_10 = arith.constant 0 : index
    %9 = vector.load %arg3[%c1_8, %c0_9, %c0_10] : memref<3x6x16xbf16, #tpu.memory_space<vmem>>, vector<1x6x16xbf16>
    %10 = vector.shape_cast %9 : vector<1x6x16xbf16> to vector<6x16xbf16>
    %cst_11 = arith.constant dense<0.000000e+00> : vector<16x16xf32>
    %11 = tpu.matmul %8, %10, %cst_11 {dimension_numbers = #tpu.dot_dimension_numbers<[1], [0], [0], [1], [0, 0, 1, 1], [], []>} : vector<16x6xbf16>, vector<6x16xbf16>, vector<16x16xf32> -> vector<16x16xf32>
    %12 = arith.addf %6, %11 : vector<16x16xf32>
    %c2 = arith.constant 2 : index
    %c0_12 = arith.constant 0 : index
    %c0_13 = arith.constant 0 : index
    %13 = vector.load %arg0[%c2, %c0_12, %c0_13] : memref<3x16x6xbf16, #tpu.memory_space<vmem>>, vector<1x16x6xbf16>
    %14 = vector.shape_cast %13 : vector<1x16x6xbf16> to vector<16x6xbf16>
    %c2_14 = arith.constant 2 : index
    %c0_15 = arith.constant 0 : index
    %c0_16 = arith.constant 0 : index
    %15 = vector.load %arg3[%c2_14, %c0_15, %c0_16] : memref<3x6x16xbf16, #tpu.memory_space<vmem>>, vector<1x6x16xbf16>
    %16 = vector.shape_cast %15 : vector<1x6x16xbf16> to vector<6x16xbf16>
    %cst_17 = arith.constant dense<0.000000e+00> : vector<16x16xf32>
    %17 = tpu.matmul %14, %16, %cst_17 {dimension_numbers = #tpu.dot_dimension_numbers<[1], [0], [0], [1], [0, 0, 1, 1], [], []>} : vector<16x6xbf16>, vector<6x16xbf16>, vector<16x16xf32> -> vector<16x16xf32>
    %18 = arith.addf %12, %17 : vector<16x16xf32>
    %c0_18 = arith.constant 0 : index
    %c0_19 = arith.constant 0 : index
    %19 = vector.load %arg4[%c0_18, %c0_19] : memref<1x16xf32, #tpu.memory_space<vmem>>, vector<1x16xf32>
    %20 = vector.broadcast %19 : vector<1x16xf32> to vector<16x16xf32>
    %21 = arith.addf %18, %20 : vector<16x16xf32>
    %22 = math.tanh %21 : vector<16x16xf32>
    %23 = arith.truncf %22 : vector<16x16xf32> to vector<16x16xbf16>
    %c0_20 = arith.constant 0 : index
    %c0_21 = arith.constant 0 : index
    %24 = vector.load %arg5[%c0_20, %c0_21] : memref<16x12xbf16, #tpu.memory_space<vmem>>, vector<16x12xbf16>
    %cst_22 = arith.constant dense<0.000000e+00> : vector<16x12xf32>
    %25 = tpu.matmul %23, %24, %cst_22 {dimension_numbers = #tpu.dot_dimension_numbers<[1], [0], [0], [1], [0, 0, 1, 1], [], []>} : vector<16x16xbf16>, vector<16x12xbf16>, vector<16x12xf32> -> vector<16x12xf32>
    %c0_23 = arith.constant 0 : index
    %c0_24 = arith.constant 0 : index
    %26 = vector.load %arg6[%c0_23, %c0_24] : memref<1x12xf32, #tpu.memory_space<vmem>>, vector<1x12xf32>
    %27 = vector.broadcast %26 : vector<1x12xf32> to vector<16x12xf32>
    %28 = arith.addf %25, %27 : vector<16x12xf32>
    %cst_25 = arith.constant dense<0xFF800000> : vector<16xf32>
    %29 = vector.multi_reduction <maximumf>, %28, %cst_25 [1] : vector<16x12xf32> to vector<16xf32>
    %30 = vector.shape_cast %29 : vector<16xf32> to vector<16x1xf32>
    %31 = vector.broadcast %30 : vector<16x1xf32> to vector<16x12xf32>
    %32 = arith.subf %28, %31 : vector<16x12xf32>
    %33 = math.exp %32 : vector<16x12xf32>
    %cst_26 = arith.constant dense<0.000000e+00> : vector<16xf32>
    %34 = vector.multi_reduction <add>, %33, %cst_26 [1] : vector<16x12xf32> to vector<16xf32>
    %35 = vector.shape_cast %34 : vector<16xf32> to vector<16x1xf32>
    %36 = tpu.reciprocal %35 {approx = true} : vector<16x1xf32> -> vector<16x1xf32>
    %37 = vector.broadcast %36 : vector<16x1xf32> to vector<16x12xf32>
    %38 = arith.mulf %33, %37 : vector<16x12xf32>
    %c0_27 = arith.constant 0 : index
    %c0_28 = arith.constant 0 : index
    %39 = vector.load %arg8[%c0_27, %c0_28] : memref<32x128xbf16, #tpu.memory_space<vmem>>, vector<32x128xbf16>
    %40 = tpu.iota {dimensions = array<i32: 1>} : vector<4x128xi32>
    %c64_i32 = arith.constant 64 : i32
    %41 = vector.broadcast %c64_i32 : i32 to vector<4x128xi32>
    %42 = arith.cmpi sge, %40, %41 : vector<4x128xi32>
    %c96_i32 = arith.constant 96 : i32
    %43 = vector.broadcast %c96_i32 : i32 to vector<4x128xi32>
    %44 = arith.cmpi slt, %40, %43 : vector<4x128xi32>
    %45 = arith.andi %42, %44 : vector<4x128xi1>
    %cst_29 = arith.constant 0.000000e+00 : f32
    %46 = vector.broadcast %cst_29 : f32 to vector<4x32xf32>
    %cst_30 = arith.constant 0.000000e+00 : f32
    %47 = vector.broadcast %cst_30 : f32 to vector<4x32xf32>
    %c0_i32 = arith.constant 0 : i32
    %48 = arith.index_cast %c0_i32 : i32 to index
    %c0_31 = arith.constant 0 : index
    %c0_32 = arith.constant 0 : index
    %49 = vector.load %arg7[%48, %c0_31, %c0_32] : memref<8x4x128xf32, #tpu.memory_space<vmem>>, vector<1x4x128xf32>
    %50 = vector.shape_cast %49 : vector<1x4x128xf32> to vector<4x128xf32>
    %51 = arith.truncf %46 : vector<4x32xf32> to vector<4x32xbf16>
    %cst_33 = arith.constant dense<0.000000e+00> : vector<4x128xf32>
    %52 = tpu.matmul %51, %39, %cst_33 {dimension_numbers = #tpu.dot_dimension_numbers<[1], [0], [0], [1], [0, 0, 1, 1], [], []>} : vector<4x32xbf16>, vector<32x128xbf16>, vector<4x128xf32> -> vector<4x128xf32>
    %53 = arith.addf %50, %52 : vector<4x128xf32>
    %54 = math.tanh %53 : vector<4x128xf32>
    %55 = arith.negf %53 : vector<4x128xf32>
    %56 = math.exp %55 : vector<4x128xf32>
    %cst_34 = arith.constant 1.000000e+00 : f32
    %57 = vector.broadcast %cst_34 : f32 to vector<4x128xf32>
    %58 = arith.addf %57, %56 : vector<4x128xf32>
    %59 = arith.divf %57, %58 : vector<4x128xf32>
    %60 = arith.select %45, %54, %59 : vector<4x128xi1>, vector<4x128xf32>
    %61 = vector.extract_strided_slice %60 {offsets = [0, 0], sizes = [4, 32], strides = [1, 1]} : vector<4x128xf32> to vector<4x32xf32>
    %62 = vector.extract_strided_slice %60 {offsets = [0, 32], sizes = [4, 32], strides = [1, 1]} : vector<4x128xf32> to vector<4x32xf32>
    %63 = vector.extract_strided_slice %60 {offsets = [0, 64], sizes = [4, 32], strides = [1, 1]} : vector<4x128xf32> to vector<4x32xf32>
    %64 = vector.extract_strided_slice %60 {offsets = [0, 96], sizes = [4, 32], strides = [1, 1]} : vector<4x128xf32> to vector<4x32xf32>
    %65 = arith.mulf %62, %47 : vector<4x32xf32>
    %66 = arith.mulf %61, %63 : vector<4x32xf32>
    %67 = arith.addf %65, %66 : vector<4x32xf32>
    %68 = math.tanh %67 : vector<4x32xf32>
    %69 = arith.mulf %64, %68 : vector<4x32xf32>
    %70 = vector.extract_strided_slice %69 {offsets = [0, 0], sizes = [2, 32], strides = [1, 1]} : vector<4x32xf32> to vector<2x32xf32>
    %c2_i32 = arith.constant 2 : i32
    %71 = arith.muli %c0_i32, %c2_i32 : i32
    %72 = arith.index_cast %71 : i32 to index
    %c0_35 = arith.constant 0 : index
    %73 = vector.load %arg14[%72, %c0_35] : memref<16x32xf32, #tpu.memory_space<vmem>>, vector<2x32xf32>
    tpu.vector_store %arg14[%72, %c0_35], %70 {strides = array<i32>} : memref<16x32xf32, #tpu.memory_space<vmem>>, vector<2x32xf32>,
    %74 = vector.extract_strided_slice %69 {offsets = [2, 0], sizes = [2, 32], strides = [1, 1]} : vector<4x32xf32> to vector<2x32xf32>
    %c7_i32 = arith.constant 7 : i32
    %75 = arith.subi %c7_i32, %c0_i32 : i32
    %c2_i32_36 = arith.constant 2 : i32
    %76 = arith.muli %75, %c2_i32_36 : i32
    %77 = arith.index_cast %76 : i32 to index
    %c0_37 = arith.constant 0 : index
    %78 = vector.load %arg15[%77, %c0_37] : memref<16x32xf32, #tpu.memory_space<vmem>>, vector<2x32xf32>
    tpu.vector_store %arg15[%77, %c0_37], %74 {strides = array<i32>} : memref<16x32xf32, #tpu.memory_space<vmem>>, vector<2x32xf32>,
    %c1_i32 = arith.constant 1 : i32
    %79 = arith.index_cast %c1_i32 : i32 to index
    %c0_38 = arith.constant 0 : index
    %c0_39 = arith.constant 0 : index
    %80 = vector.load %arg7[%79, %c0_38, %c0_39] : memref<8x4x128xf32, #tpu.memory_space<vmem>>, vector<1x4x128xf32>
    %81 = vector.shape_cast %80 : vector<1x4x128xf32> to vector<4x128xf32>
    %82 = arith.truncf %69 : vector<4x32xf32> to vector<4x32xbf16>
    %cst_40 = arith.constant dense<0.000000e+00> : vector<4x128xf32>
    %83 = tpu.matmul %82, %39, %cst_40 {dimension_numbers = #tpu.dot_dimension_numbers<[1], [0], [0], [1], [0, 0, 1, 1], [], []>} : vector<4x32xbf16>, vector<32x128xbf16>, vector<4x128xf32> -> vector<4x128xf32>
    %84 = arith.addf %81, %83 : vector<4x128xf32>
    %85 = math.tanh %84 : vector<4x128xf32>
    %86 = arith.negf %84 : vector<4x128xf32>
    %87 = math.exp %86 : vector<4x128xf32>
    %cst_41 = arith.constant 1.000000e+00 : f32
    %88 = vector.broadcast %cst_41 : f32 to vector<4x128xf32>
    %89 = arith.addf %88, %87 : vector<4x128xf32>
    %90 = arith.divf %88, %89 : vector<4x128xf32>
    %91 = arith.select %45, %85, %90 : vector<4x128xi1>, vector<4x128xf32>
    %92 = vector.extract_strided_slice %91 {offsets = [0, 0], sizes = [4, 32], strides = [1, 1]} : vector<4x128xf32> to vector<4x32xf32>
    %93 = vector.extract_strided_slice %91 {offsets = [0, 32], sizes = [4, 32], strides = [1, 1]} : vector<4x128xf32> to vector<4x32xf32>
    %94 = vector.extract_strided_slice %91 {offsets = [0, 64], sizes = [4, 32], strides = [1, 1]} : vector<4x128xf32> to vector<4x32xf32>
    %95 = vector.extract_strided_slice %91 {offsets = [0, 96], sizes = [4, 32], strides = [1, 1]} : vector<4x128xf32> to vector<4x32xf32>
    %96 = arith.mulf %93, %67 : vector<4x32xf32>
    %97 = arith.mulf %92, %94 : vector<4x32xf32>
    %98 = arith.addf %96, %97 : vector<4x32xf32>
    %99 = math.tanh %98 : vector<4x32xf32>
    %100 = arith.mulf %95, %99 : vector<4x32xf32>
    %101 = vector.extract_strided_slice %100 {offsets = [0, 0], sizes = [2, 32], strides = [1, 1]} : vector<4x32xf32> to vector<2x32xf32>
    %c2_i32_42 = arith.constant 2 : i32
    %102 = arith.muli %c1_i32, %c2_i32_42 : i32
    %103 = arith.index_cast %102 : i32 to index
    %c0_43 = arith.constant 0 : index
    %104 = vector.load %arg14[%103, %c0_43] : memref<16x32xf32, #tpu.memory_space<vmem>>, vector<2x32xf32>
    tpu.vector_store %arg14[%103, %c0_43], %101 {strides = array<i32>} : memref<16x32xf32, #tpu.memory_space<vmem>>, vector<2x32xf32>,
    %105 = vector.extract_strided_slice %100 {offsets = [2, 0], sizes = [2, 32], strides = [1, 1]} : vector<4x32xf32> to vector<2x32xf32>
    %c7_i32_44 = arith.constant 7 : i32
    %106 = arith.subi %c7_i32_44, %c1_i32 : i32
    %c2_i32_45 = arith.constant 2 : i32
    %107 = arith.muli %106, %c2_i32_45 : i32
    %108 = arith.index_cast %107 : i32 to index
    %c0_46 = arith.constant 0 : index
    %109 = vector.load %arg15[%108, %c0_46] : memref<16x32xf32, #tpu.memory_space<vmem>>, vector<2x32xf32>
    tpu.vector_store %arg15[%108, %c0_46], %105 {strides = array<i32>} : memref<16x32xf32, #tpu.memory_space<vmem>>, vector<2x32xf32>,
    %c2_i32_47 = arith.constant 2 : i32
    %110 = arith.index_cast %c2_i32_47 : i32 to index
    %c0_48 = arith.constant 0 : index
    %c0_49 = arith.constant 0 : index
    %111 = vector.load %arg7[%110, %c0_48, %c0_49] : memref<8x4x128xf32, #tpu.memory_space<vmem>>, vector<1x4x128xf32>
    %112 = vector.shape_cast %111 : vector<1x4x128xf32> to vector<4x128xf32>
    %113 = arith.truncf %100 : vector<4x32xf32> to vector<4x32xbf16>
    %cst_50 = arith.constant dense<0.000000e+00> : vector<4x128xf32>
    %114 = tpu.matmul %113, %39, %cst_50 {dimension_numbers = #tpu.dot_dimension_numbers<[1], [0], [0], [1], [0, 0, 1, 1], [], []>} : vector<4x32xbf16>, vector<32x128xbf16>, vector<4x128xf32> -> vector<4x128xf32>
    %115 = arith.addf %112, %114 : vector<4x128xf32>
    %116 = math.tanh %115 : vector<4x128xf32>
    %117 = arith.negf %115 : vector<4x128xf32>
    %118 = math.exp %117 : vector<4x128xf32>
    %cst_51 = arith.constant 1.000000e+00 : f32
    %119 = vector.broadcast %cst_51 : f32 to vector<4x128xf32>
    %120 = arith.addf %119, %118 : vector<4x128xf32>
    %121 = arith.divf %119, %120 : vector<4x128xf32>
    %122 = arith.select %45, %116, %121 : vector<4x128xi1>, vector<4x128xf32>
    %123 = vector.extract_strided_slice %122 {offsets = [0, 0], sizes = [4, 32], strides = [1, 1]} : vector<4x128xf32> to vector<4x32xf32>
    %124 = vector.extract_strided_slice %122 {offsets = [0, 32], sizes = [4, 32], strides = [1, 1]} : vector<4x128xf32> to vector<4x32xf32>
    %125 = vector.extract_strided_slice %122 {offsets = [0, 64], sizes = [4, 32], strides = [1, 1]} : vector<4x128xf32> to vector<4x32xf32>
    %126 = vector.extract_strided_slice %122 {offsets = [0, 96], sizes = [4, 32], strides = [1, 1]} : vector<4x128xf32> to vector<4x32xf32>
    %127 = arith.mulf %124, %98 : vector<4x32xf32>
    %128 = arith.mulf %123, %125 : vector<4x32xf32>
    %129 = arith.addf %127, %128 : vector<4x32xf32>
    %130 = math.tanh %129 : vector<4x32xf32>
    %131 = arith.mulf %126, %130 : vector<4x32xf32>
    %132 = vector.extract_strided_slice %131 {offsets = [0, 0], sizes = [2, 32], strides = [1, 1]} : vector<4x32xf32> to vector<2x32xf32>
    %c2_i32_52 = arith.constant 2 : i32
    %133 = arith.muli %c2_i32_47, %c2_i32_52 : i32
    %134 = arith.index_cast %133 : i32 to index
    %c0_53 = arith.constant 0 : index
    %135 = vector.load %arg14[%134, %c0_53] : memref<16x32xf32, #tpu.memory_space<vmem>>, vector<2x32xf32>
    tpu.vector_store %arg14[%134, %c0_53], %132 {strides = array<i32>} : memref<16x32xf32, #tpu.memory_space<vmem>>, vector<2x32xf32>,
    %136 = vector.extract_strided_slice %131 {offsets = [2, 0], sizes = [2, 32], strides = [1, 1]} : vector<4x32xf32> to vector<2x32xf32>
    %c7_i32_54 = arith.constant 7 : i32
    %137 = arith.subi %c7_i32_54, %c2_i32_47 : i32
    %c2_i32_55 = arith.constant 2 : i32
    %138 = arith.muli %137, %c2_i32_55 : i32
    %139 = arith.index_cast %138 : i32 to index
    %c0_56 = arith.constant 0 : index
    %140 = vector.load %arg15[%139, %c0_56] : memref<16x32xf32, #tpu.memory_space<vmem>>, vector<2x32xf32>
    tpu.vector_store %arg15[%139, %c0_56], %136 {strides = array<i32>} : memref<16x32xf32, #tpu.memory_space<vmem>>, vector<2x32xf32>,
    %c3_i32 = arith.constant 3 : i32
    %141 = arith.index_cast %c3_i32 : i32 to index
    %c0_57 = arith.constant 0 : index
    %c0_58 = arith.constant 0 : index
    %142 = vector.load %arg7[%141, %c0_57, %c0_58] : memref<8x4x128xf32, #tpu.memory_space<vmem>>, vector<1x4x128xf32>
    %143 = vector.shape_cast %142 : vector<1x4x128xf32> to vector<4x128xf32>
    %144 = arith.truncf %131 : vector<4x32xf32> to vector<4x32xbf16>
    %cst_59 = arith.constant dense<0.000000e+00> : vector<4x128xf32>
    %145 = tpu.matmul %144, %39, %cst_59 {dimension_numbers = #tpu.dot_dimension_numbers<[1], [0], [0], [1], [0, 0, 1, 1], [], []>} : vector<4x32xbf16>, vector<32x128xbf16>, vector<4x128xf32> -> vector<4x128xf32>
    %146 = arith.addf %143, %145 : vector<4x128xf32>
    %147 = math.tanh %146 : vector<4x128xf32>
    %148 = arith.negf %146 : vector<4x128xf32>
    %149 = math.exp %148 : vector<4x128xf32>
    %cst_60 = arith.constant 1.000000e+00 : f32
    %150 = vector.broadcast %cst_60 : f32 to vector<4x128xf32>
    %151 = arith.addf %150, %149 : vector<4x128xf32>
    %152 = arith.divf %150, %151 : vector<4x128xf32>
    %153 = arith.select %45, %147, %152 : vector<4x128xi1>, vector<4x128xf32>
    %154 = vector.extract_strided_slice %153 {offsets = [0, 0], sizes = [4, 32], strides = [1, 1]} : vector<4x128xf32> to vector<4x32xf32>
    %155 = vector.extract_strided_slice %153 {offsets = [0, 32], sizes = [4, 32], strides = [1, 1]} : vector<4x128xf32> to vector<4x32xf32>
    %156 = vector.extract_strided_slice %153 {offsets = [0, 64], sizes = [4, 32], strides = [1, 1]} : vector<4x128xf32> to vector<4x32xf32>
    %157 = vector.extract_strided_slice %153 {offsets = [0, 96], sizes = [4, 32], strides = [1, 1]} : vector<4x128xf32> to vector<4x32xf32>
    %158 = arith.mulf %155, %129 : vector<4x32xf32>
    %159 = arith.mulf %154, %156 : vector<4x32xf32>
    %160 = arith.addf %158, %159 : vector<4x32xf32>
    %161 = math.tanh %160 : vector<4x32xf32>
    %162 = arith.mulf %157, %161 : vector<4x32xf32>
    %163 = vector.extract_strided_slice %162 {offsets = [0, 0], sizes = [2, 32], strides = [1, 1]} : vector<4x32xf32> to vector<2x32xf32>
    %c2_i32_61 = arith.constant 2 : i32
    %164 = arith.muli %c3_i32, %c2_i32_61 : i32
    %165 = arith.index_cast %164 : i32 to index
    %c0_62 = arith.constant 0 : index
    %166 = vector.load %arg14[%165, %c0_62] : memref<16x32xf32, #tpu.memory_space<vmem>>, vector<2x32xf32>
    tpu.vector_store %arg14[%165, %c0_62], %163 {strides = array<i32>} : memref<16x32xf32, #tpu.memory_space<vmem>>, vector<2x32xf32>,
    %167 = vector.extract_strided_slice %162 {offsets = [2, 0], sizes = [2, 32], strides = [1, 1]} : vector<4x32xf32> to vector<2x32xf32>
    %c7_i32_63 = arith.constant 7 : i32
    %168 = arith.subi %c7_i32_63, %c3_i32 : i32
    %c2_i32_64 = arith.constant 2 : i32
    %169 = arith.muli %168, %c2_i32_64 : i32
    %170 = arith.index_cast %169 : i32 to index
    %c0_65 = arith.constant 0 : index
    %171 = vector.load %arg15[%170, %c0_65] : memref<16x32xf32, #tpu.memory_space<vmem>>, vector<2x32xf32>
    tpu.vector_store %arg15[%170, %c0_65], %167 {strides = array<i32>} : memref<16x32xf32, #tpu.memory_space<vmem>>, vector<2x32xf32>,
    %c4_i32 = arith.constant 4 : i32
    %172 = arith.index_cast %c4_i32 : i32 to index
    %c0_66 = arith.constant 0 : index
    %c0_67 = arith.constant 0 : index
    %173 = vector.load %arg7[%172, %c0_66, %c0_67] : memref<8x4x128xf32, #tpu.memory_space<vmem>>, vector<1x4x128xf32>
    %174 = vector.shape_cast %173 : vector<1x4x128xf32> to vector<4x128xf32>
    %175 = arith.truncf %162 : vector<4x32xf32> to vector<4x32xbf16>
    %cst_68 = arith.constant dense<0.000000e+00> : vector<4x128xf32>
    %176 = tpu.matmul %175, %39, %cst_68 {dimension_numbers = #tpu.dot_dimension_numbers<[1], [0], [0], [1], [0, 0, 1, 1], [], []>} : vector<4x32xbf16>, vector<32x128xbf16>, vector<4x128xf32> -> vector<4x128xf32>
    %177 = arith.addf %174, %176 : vector<4x128xf32>
    %178 = math.tanh %177 : vector<4x128xf32>
    %179 = arith.negf %177 : vector<4x128xf32>
    %180 = math.exp %179 : vector<4x128xf32>
    %cst_69 = arith.constant 1.000000e+00 : f32
    %181 = vector.broadcast %cst_69 : f32 to vector<4x128xf32>
    %182 = arith.addf %181, %180 : vector<4x128xf32>
    %183 = arith.divf %181, %182 : vector<4x128xf32>
    %184 = arith.select %45, %178, %183 : vector<4x128xi1>, vector<4x128xf32>
    %185 = vector.extract_strided_slice %184 {offsets = [0, 0], sizes = [4, 32], strides = [1, 1]} : vector<4x128xf32> to vector<4x32xf32>
    %186 = vector.extract_strided_slice %184 {offsets = [0, 32], sizes = [4, 32], strides = [1, 1]} : vector<4x128xf32> to vector<4x32xf32>
    %187 = vector.extract_strided_slice %184 {offsets = [0, 64], sizes = [4, 32], strides = [1, 1]} : vector<4x128xf32> to vector<4x32xf32>
    %188 = vector.extract_strided_slice %184 {offsets = [0, 96], sizes = [4, 32], strides = [1, 1]} : vector<4x128xf32> to vector<4x32xf32>
    %189 = arith.mulf %186, %160 : vector<4x32xf32>
    %190 = arith.mulf %185, %187 : vector<4x32xf32>
    %191 = arith.addf %189, %190 : vector<4x32xf32>
    %192 = math.tanh %191 : vector<4x32xf32>
    %193 = arith.mulf %188, %192 : vector<4x32xf32>
    %194 = vector.extract_strided_slice %193 {offsets = [0, 0], sizes = [2, 32], strides = [1, 1]} : vector<4x32xf32> to vector<2x32xf32>
    %c2_i32_70 = arith.constant 2 : i32
    %195 = arith.muli %c4_i32, %c2_i32_70 : i32
    %196 = arith.index_cast %195 : i32 to index
    %c0_71 = arith.constant 0 : index
    %197 = vector.load %arg14[%196, %c0_71] : memref<16x32xf32, #tpu.memory_space<vmem>>, vector<2x32xf32>
    tpu.vector_store %arg14[%196, %c0_71], %194 {strides = array<i32>} : memref<16x32xf32, #tpu.memory_space<vmem>>, vector<2x32xf32>,
    %198 = vector.extract_strided_slice %193 {offsets = [2, 0], sizes = [2, 32], strides = [1, 1]} : vector<4x32xf32> to vector<2x32xf32>
    %c7_i32_72 = arith.constant 7 : i32
    %199 = arith.subi %c7_i32_72, %c4_i32 : i32
    %c2_i32_73 = arith.constant 2 : i32
    %200 = arith.muli %199, %c2_i32_73 : i32
    %201 = arith.index_cast %200 : i32 to index
    %c0_74 = arith.constant 0 : index
    %202 = vector.load %arg15[%201, %c0_74] : memref<16x32xf32, #tpu.memory_space<vmem>>, vector<2x32xf32>
    tpu.vector_store %arg15[%201, %c0_74], %198 {strides = array<i32>} : memref<16x32xf32, #tpu.memory_space<vmem>>, vector<2x32xf32>,
    %c5_i32 = arith.constant 5 : i32
    %203 = arith.index_cast %c5_i32 : i32 to index
    %c0_75 = arith.constant 0 : index
    %c0_76 = arith.constant 0 : index
    %204 = vector.load %arg7[%203, %c0_75, %c0_76] : memref<8x4x128xf32, #tpu.memory_space<vmem>>, vector<1x4x128xf32>
    %205 = vector.shape_cast %204 : vector<1x4x128xf32> to vector<4x128xf32>
    %206 = arith.truncf %193 : vector<4x32xf32> to vector<4x32xbf16>
    %cst_77 = arith.constant dense<0.000000e+00> : vector<4x128xf32>
    %207 = tpu.matmul %206, %39, %cst_77 {dimension_numbers = #tpu.dot_dimension_numbers<[1], [0], [0], [1], [0, 0, 1, 1], [], []>} : vector<4x32xbf16>, vector<32x128xbf16>, vector<4x128xf32> -> vector<4x128xf32>
    %208 = arith.addf %205, %207 : vector<4x128xf32>
    %209 = math.tanh %208 : vector<4x128xf32>
    %210 = arith.negf %208 : vector<4x128xf32>
    %211 = math.exp %210 : vector<4x128xf32>
    %cst_78 = arith.constant 1.000000e+00 : f32
    %212 = vector.broadcast %cst_78 : f32 to vector<4x128xf32>
    %213 = arith.addf %212, %211 : vector<4x128xf32>
    %214 = arith.divf %212, %213 : vector<4x128xf32>
    %215 = arith.select %45, %209, %214 : vector<4x128xi1>, vector<4x128xf32>
    %216 = vector.extract_strided_slice %215 {offsets = [0, 0], sizes = [4, 32], strides = [1, 1]} : vector<4x128xf32> to vector<4x32xf32>
    %217 = vector.extract_strided_slice %215 {offsets = [0, 32], sizes = [4, 32], strides = [1, 1]} : vector<4x128xf32> to vector<4x32xf32>
    %218 = vector.extract_strided_slice %215 {offsets = [0, 64], sizes = [4, 32], strides = [1, 1]} : vector<4x128xf32> to vector<4x32xf32>
    %219 = vector.extract_strided_slice %215 {offsets = [0, 96], sizes = [4, 32], strides = [1, 1]} : vector<4x128xf32> to vector<4x32xf32>
    %220 = arith.mulf %217, %191 : vector<4x32xf32>
    %221 = arith.mulf %216, %218 : vector<4x32xf32>
    %222 = arith.addf %220, %221 : vector<4x32xf32>
    %223 = math.tanh %222 : vector<4x32xf32>
    %224 = arith.mulf %219, %223 : vector<4x32xf32>
    %225 = vector.extract_strided_slice %224 {offsets = [0, 0], sizes = [2, 32], strides = [1, 1]} : vector<4x32xf32> to vector<2x32xf32>
    %c2_i32_79 = arith.constant 2 : i32
    %226 = arith.muli %c5_i32, %c2_i32_79 : i32
    %227 = arith.index_cast %226 : i32 to index
    %c0_80 = arith.constant 0 : index
    %228 = vector.load %arg14[%227, %c0_80] : memref<16x32xf32, #tpu.memory_space<vmem>>, vector<2x32xf32>
    tpu.vector_store %arg14[%227, %c0_80], %225 {strides = array<i32>} : memref<16x32xf32, #tpu.memory_space<vmem>>, vector<2x32xf32>,
    %229 = vector.extract_strided_slice %224 {offsets = [2, 0], sizes = [2, 32], strides = [1, 1]} : vector<4x32xf32> to vector<2x32xf32>
    %c7_i32_81 = arith.constant 7 : i32
    %230 = arith.subi %c7_i32_81, %c5_i32 : i32
    %c2_i32_82 = arith.constant 2 : i32
    %231 = arith.muli %230, %c2_i32_82 : i32
    %232 = arith.index_cast %231 : i32 to index
    %c0_83 = arith.constant 0 : index
    %233 = vector.load %arg15[%232, %c0_83] : memref<16x32xf32, #tpu.memory_space<vmem>>, vector<2x32xf32>
    tpu.vector_store %arg15[%232, %c0_83], %229 {strides = array<i32>} : memref<16x32xf32, #tpu.memory_space<vmem>>, vector<2x32xf32>,
    %c6_i32 = arith.constant 6 : i32
    %234 = arith.index_cast %c6_i32 : i32 to index
    %c0_84 = arith.constant 0 : index
    %c0_85 = arith.constant 0 : index
    %235 = vector.load %arg7[%234, %c0_84, %c0_85] : memref<8x4x128xf32, #tpu.memory_space<vmem>>, vector<1x4x128xf32>
    %236 = vector.shape_cast %235 : vector<1x4x128xf32> to vector<4x128xf32>
    %237 = arith.truncf %224 : vector<4x32xf32> to vector<4x32xbf16>
    %cst_86 = arith.constant dense<0.000000e+00> : vector<4x128xf32>
    %238 = tpu.matmul %237, %39, %cst_86 {dimension_numbers = #tpu.dot_dimension_numbers<[1], [0], [0], [1], [0, 0, 1, 1], [], []>} : vector<4x32xbf16>, vector<32x128xbf16>, vector<4x128xf32> -> vector<4x128xf32>
    %239 = arith.addf %236, %238 : vector<4x128xf32>
    %240 = math.tanh %239 : vector<4x128xf32>
    %241 = arith.negf %239 : vector<4x128xf32>
    %242 = math.exp %241 : vector<4x128xf32>
    %cst_87 = arith.constant 1.000000e+00 : f32
    %243 = vector.broadcast %cst_87 : f32 to vector<4x128xf32>
    %244 = arith.addf %243, %242 : vector<4x128xf32>
    %245 = arith.divf %243, %244 : vector<4x128xf32>
    %246 = arith.select %45, %240, %245 : vector<4x128xi1>, vector<4x128xf32>
    %247 = vector.extract_strided_slice %246 {offsets = [0, 0], sizes = [4, 32], strides = [1, 1]} : vector<4x128xf32> to vector<4x32xf32>
    %248 = vector.extract_strided_slice %246 {offsets = [0, 32], sizes = [4, 32], strides = [1, 1]} : vector<4x128xf32> to vector<4x32xf32>
    %249 = vector.extract_strided_slice %246 {offsets = [0, 64], sizes = [4, 32], strides = [1, 1]} : vector<4x128xf32> to vector<4x32xf32>
    %250 = vector.extract_strided_slice %246 {offsets = [0, 96], sizes = [4, 32], strides = [1, 1]} : vector<4x128xf32> to vector<4x32xf32>
    %251 = arith.mulf %248, %222 : vector<4x32xf32>
    %252 = arith.mulf %247, %249 : vector<4x32xf32>
    %253 = arith.addf %251, %252 : vector<4x32xf32>
    %254 = math.tanh %253 : vector<4x32xf32>
    %255 = arith.mulf %250, %254 : vector<4x32xf32>
    %256 = vector.extract_strided_slice %255 {offsets = [0, 0], sizes = [2, 32], strides = [1, 1]} : vector<4x32xf32> to vector<2x32xf32>
    %c2_i32_88 = arith.constant 2 : i32
    %257 = arith.muli %c6_i32, %c2_i32_88 : i32
    %258 = arith.index_cast %257 : i32 to index
    %c0_89 = arith.constant 0 : index
    %259 = vector.load %arg14[%258, %c0_89] : memref<16x32xf32, #tpu.memory_space<vmem>>, vector<2x32xf32>
    tpu.vector_store %arg14[%258, %c0_89], %256 {strides = array<i32>} : memref<16x32xf32, #tpu.memory_space<vmem>>, vector<2x32xf32>,
    %260 = vector.extract_strided_slice %255 {offsets = [2, 0], sizes = [2, 32], strides = [1, 1]} : vector<4x32xf32> to vector<2x32xf32>
    %c7_i32_90 = arith.constant 7 : i32
    %261 = arith.subi %c7_i32_90, %c6_i32 : i32
    %c2_i32_91 = arith.constant 2 : i32
    %262 = arith.muli %261, %c2_i32_91 : i32
    %263 = arith.index_cast %262 : i32 to index
    %c0_92 = arith.constant 0 : index
    %264 = vector.load %arg15[%263, %c0_92] : memref<16x32xf32, #tpu.memory_space<vmem>>, vector<2x32xf32>
    tpu.vector_store %arg15[%263, %c0_92], %260 {strides = array<i32>} : memref<16x32xf32, #tpu.memory_space<vmem>>, vector<2x32xf32>,
    %c7_i32_93 = arith.constant 7 : i32
    %265 = arith.index_cast %c7_i32_93 : i32 to index
    %c0_94 = arith.constant 0 : index
    %c0_95 = arith.constant 0 : index
    %266 = vector.load %arg7[%265, %c0_94, %c0_95] : memref<8x4x128xf32, #tpu.memory_space<vmem>>, vector<1x4x128xf32>
    %267 = vector.shape_cast %266 : vector<1x4x128xf32> to vector<4x128xf32>
    %268 = arith.truncf %255 : vector<4x32xf32> to vector<4x32xbf16>
    %cst_96 = arith.constant dense<0.000000e+00> : vector<4x128xf32>
    %269 = tpu.matmul %268, %39, %cst_96 {dimension_numbers = #tpu.dot_dimension_numbers<[1], [0], [0], [1], [0, 0, 1, 1], [], []>} : vector<4x32xbf16>, vector<32x128xbf16>, vector<4x128xf32> -> vector<4x128xf32>
    %270 = arith.addf %267, %269 : vector<4x128xf32>
    %271 = math.tanh %270 : vector<4x128xf32>
    %272 = arith.negf %270 : vector<4x128xf32>
    %273 = math.exp %272 : vector<4x128xf32>
    %cst_97 = arith.constant 1.000000e+00 : f32
    %274 = vector.broadcast %cst_97 : f32 to vector<4x128xf32>
    %275 = arith.addf %274, %273 : vector<4x128xf32>
    %276 = arith.divf %274, %275 : vector<4x128xf32>
    %277 = arith.select %45, %271, %276 : vector<4x128xi1>, vector<4x128xf32>
    %278 = vector.extract_strided_slice %277 {offsets = [0, 0], sizes = [4, 32], strides = [1, 1]} : vector<4x128xf32> to vector<4x32xf32>
    %279 = vector.extract_strided_slice %277 {offsets = [0, 32], sizes = [4, 32], strides = [1, 1]} : vector<4x128xf32> to vector<4x32xf32>
    %280 = vector.extract_strided_slice %277 {offsets = [0, 64], sizes = [4, 32], strides = [1, 1]} : vector<4x128xf32> to vector<4x32xf32>
    %281 = vector.extract_strided_slice %277 {offsets = [0, 96], sizes = [4, 32], strides = [1, 1]} : vector<4x128xf32> to vector<4x32xf32>
    %282 = arith.mulf %279, %253 : vector<4x32xf32>
    %283 = arith.mulf %278, %280 : vector<4x32xf32>
    %284 = arith.addf %282, %283 : vector<4x32xf32>
    %285 = math.tanh %284 : vector<4x32xf32>
    %286 = arith.mulf %281, %285 : vector<4x32xf32>
    %287 = vector.extract_strided_slice %286 {offsets = [0, 0], sizes = [2, 32], strides = [1, 1]} : vector<4x32xf32> to vector<2x32xf32>
    %c2_i32_98 = arith.constant 2 : i32
    %288 = arith.muli %c7_i32_93, %c2_i32_98 : i32
    %289 = arith.index_cast %288 : i32 to index
    %c0_99 = arith.constant 0 : index
    %290 = vector.load %arg14[%289, %c0_99] : memref<16x32xf32, #tpu.memory_space<vmem>>, vector<2x32xf32>
    tpu.vector_store %arg14[%289, %c0_99], %287 {strides = array<i32>} : memref<16x32xf32, #tpu.memory_space<vmem>>, vector<2x32xf32>,
    %291 = vector.extract_strided_slice %286 {offsets = [2, 0], sizes = [2, 32], strides = [1, 1]} : vector<4x32xf32> to vector<2x32xf32>
    %c7_i32_100 = arith.constant 7 : i32
    %292 = arith.subi %c7_i32_100, %c7_i32_93 : i32
    %c2_i32_101 = arith.constant 2 : i32
    %293 = arith.muli %292, %c2_i32_101 : i32
    %294 = arith.index_cast %293 : i32 to index
    %c0_102 = arith.constant 0 : index
    %295 = vector.load %arg15[%294, %c0_102] : memref<16x32xf32, #tpu.memory_space<vmem>>, vector<2x32xf32>
    tpu.vector_store %arg15[%294, %c0_102], %291 {strides = array<i32>} : memref<16x32xf32, #tpu.memory_space<vmem>>, vector<2x32xf32>,
    %c8_i32 = arith.constant 8 : i32
    %c0_103 = arith.constant 0 : index
    %c0_104 = arith.constant 0 : index
    %296 = vector.load %arg10[%c0_103, %c0_104] : memref<32x128xbf16, #tpu.memory_space<vmem>>, vector<32x128xbf16>
    %297 = tpu.iota {dimensions = array<i32: 1>} : vector<2x128xi32>
    %c64_i32_105 = arith.constant 64 : i32
    %298 = vector.broadcast %c64_i32_105 : i32 to vector<2x128xi32>
    %299 = arith.cmpi sge, %297, %298 : vector<2x128xi32>
    %c96_i32_106 = arith.constant 96 : i32
    %300 = vector.broadcast %c96_i32_106 : i32 to vector<2x128xi32>
    %301 = arith.cmpi slt, %297, %300 : vector<2x128xi32>
    %302 = arith.andi %299, %301 : vector<2x128xi1>
    %303 = vector.extract_strided_slice %286 {offsets = [0, 0], sizes = [2, 32], strides = [1, 1]} : vector<4x32xf32> to vector<2x32xf32>
    %c0_107 = arith.constant 0 : index
    %c0_108 = arith.constant 0 : index
    %304 = vector.load %arg16[%c0_107, %c0_108] : memref<12x32xf32, #tpu.memory_space<vmem>>, vector<2x32xf32>
    tpu.vector_store %arg16[%c0_107, %c0_108], %303 {strides = array<i32>} : memref<12x32xf32, #tpu.memory_space<vmem>>, vector<2x32xf32>,
    %305 = vector.extract_strided_slice %286 {offsets = [0, 0], sizes = [2, 32], strides = [1, 1]} : vector<4x32xf32> to vector<2x32xf32>
    %306 = vector.extract_strided_slice %284 {offsets = [0, 0], sizes = [2, 32], strides = [1, 1]} : vector<4x32xf32> to vector<2x32xf32>
    %c0_i32_109 = arith.constant 0 : i32
    %307 = arith.index_cast %c0_i32_109 : i32 to index
    %c0_110 = arith.constant 0 : index
    %c0_111 = arith.constant 0 : index
    %308 = vector.load %arg9[%307, %c0_110, %c0_111] : memref<5x2x128xf32, #tpu.memory_space<vmem>>, vector<1x2x128xf32>
    %309 = vector.shape_cast %308 : vector<1x2x128xf32> to vector<2x128xf32>
    %310 = arith.truncf %305 : vector<2x32xf32> to vector<2x32xbf16>
    %cst_112 = arith.constant dense<0.000000e+00> : vector<2x128xf32>
    %311 = tpu.matmul %310, %296, %cst_112 {dimension_numbers = #tpu.dot_dimension_numbers<[1], [0], [0], [1], [0, 0, 1, 1], [], []>} : vector<2x32xbf16>, vector<32x128xbf16>, vector<2x128xf32> -> vector<2x128xf32>
    %312 = arith.addf %309, %311 : vector<2x128xf32>
    %313 = math.tanh %312 : vector<2x128xf32>
    %314 = arith.negf %312 : vector<2x128xf32>
    %315 = math.exp %314 : vector<2x128xf32>
    %cst_113 = arith.constant 1.000000e+00 : f32
    %316 = vector.broadcast %cst_113 : f32 to vector<2x128xf32>
    %317 = arith.addf %316, %315 : vector<2x128xf32>
    %318 = arith.divf %316, %317 : vector<2x128xf32>
    %319 = arith.select %302, %313, %318 : vector<2x128xi1>, vector<2x128xf32>
    %320 = vector.extract_strided_slice %319 {offsets = [0, 0], sizes = [2, 32], strides = [1, 1]} : vector<2x128xf32> to vector<2x32xf32>
    %321 = vector.extract_strided_slice %319 {offsets = [0, 32], sizes = [2, 32], strides = [1, 1]} : vector<2x128xf32> to vector<2x32xf32>
    %322 = vector.extract_strided_slice %319 {offsets = [0, 64], sizes = [2, 32], strides = [1, 1]} : vector<2x128xf32> to vector<2x32xf32>
    %323 = vector.extract_strided_slice %319 {offsets = [0, 96], sizes = [2, 32], strides = [1, 1]} : vector<2x128xf32> to vector<2x32xf32>
    %324 = arith.mulf %321, %306 : vector<2x32xf32>
    %325 = arith.mulf %320, %322 : vector<2x32xf32>
    %326 = arith.addf %324, %325 : vector<2x32xf32>
    %327 = math.tanh %326 : vector<2x32xf32>
    %328 = arith.mulf %323, %327 : vector<2x32xf32>
    %c1_i32_114 = arith.constant 1 : i32
    %329 = arith.addi %c0_i32_109, %c1_i32_114 : i32
    %c2_i32_115 = arith.constant 2 : i32
    %330 = arith.muli %329, %c2_i32_115 : i32
    %331 = arith.index_cast %330 : i32 to index
    %c0_116 = arith.constant 0 : index
    %332 = vector.load %arg16[%331, %c0_116] : memref<12x32xf32, #tpu.memory_space<vmem>>, vector<2x32xf32>
    tpu.vector_store %arg16[%331, %c0_116], %328 {strides = array<i32>} : memref<12x32xf32, #tpu.memory_space<vmem>>, vector<2x32xf32>,
    %c1_i32_117 = arith.constant 1 : i32
    %333 = arith.index_cast %c1_i32_117 : i32 to index
    %c0_118 = arith.constant 0 : index
    %c0_119 = arith.constant 0 : index
    %334 = vector.load %arg9[%333, %c0_118, %c0_119] : memref<5x2x128xf32, #tpu.memory_space<vmem>>, vector<1x2x128xf32>
    %335 = vector.shape_cast %334 : vector<1x2x128xf32> to vector<2x128xf32>
    %336 = arith.truncf %328 : vector<2x32xf32> to vector<2x32xbf16>
    %cst_120 = arith.constant dense<0.000000e+00> : vector<2x128xf32>
    %337 = tpu.matmul %336, %296, %cst_120 {dimension_numbers = #tpu.dot_dimension_numbers<[1], [0], [0], [1], [0, 0, 1, 1], [], []>} : vector<2x32xbf16>, vector<32x128xbf16>, vector<2x128xf32> -> vector<2x128xf32>
    %338 = arith.addf %335, %337 : vector<2x128xf32>
    %339 = math.tanh %338 : vector<2x128xf32>
    %340 = arith.negf %338 : vector<2x128xf32>
    %341 = math.exp %340 : vector<2x128xf32>
    %cst_121 = arith.constant 1.000000e+00 : f32
    %342 = vector.broadcast %cst_121 : f32 to vector<2x128xf32>
    %343 = arith.addf %342, %341 : vector<2x128xf32>
    %344 = arith.divf %342, %343 : vector<2x128xf32>
    %345 = arith.select %302, %339, %344 : vector<2x128xi1>, vector<2x128xf32>
    %346 = vector.extract_strided_slice %345 {offsets = [0, 0], sizes = [2, 32], strides = [1, 1]} : vector<2x128xf32> to vector<2x32xf32>
    %347 = vector.extract_strided_slice %345 {offsets = [0, 32], sizes = [2, 32], strides = [1, 1]} : vector<2x128xf32> to vector<2x32xf32>
    %348 = vector.extract_strided_slice %345 {offsets = [0, 64], sizes = [2, 32], strides = [1, 1]} : vector<2x128xf32> to vector<2x32xf32>
    %349 = vector.extract_strided_slice %345 {offsets = [0, 96], sizes = [2, 32], strides = [1, 1]} : vector<2x128xf32> to vector<2x32xf32>
    %350 = arith.mulf %347, %326 : vector<2x32xf32>
    %351 = arith.mulf %346, %348 : vector<2x32xf32>
    %352 = arith.addf %350, %351 : vector<2x32xf32>
    %353 = math.tanh %352 : vector<2x32xf32>
    %354 = arith.mulf %349, %353 : vector<2x32xf32>
    %c1_i32_122 = arith.constant 1 : i32
    %355 = arith.addi %c1_i32_117, %c1_i32_122 : i32
    %c2_i32_123 = arith.constant 2 : i32
    %356 = arith.muli %355, %c2_i32_123 : i32
    %357 = arith.index_cast %356 : i32 to index
    %c0_124 = arith.constant 0 : index
    %358 = vector.load %arg16[%357, %c0_124] : memref<12x32xf32, #tpu.memory_space<vmem>>, vector<2x32xf32>
    tpu.vector_store %arg16[%357, %c0_124], %354 {strides = array<i32>} : memref<12x32xf32, #tpu.memory_space<vmem>>, vector<2x32xf32>,
    %c2_i32_125 = arith.constant 2 : i32
    %359 = arith.index_cast %c2_i32_125 : i32 to index
    %c0_126 = arith.constant 0 : index
    %c0_127 = arith.constant 0 : index
    %360 = vector.load %arg9[%359, %c0_126, %c0_127] : memref<5x2x128xf32, #tpu.memory_space<vmem>>, vector<1x2x128xf32>
    %361 = vector.shape_cast %360 : vector<1x2x128xf32> to vector<2x128xf32>
    %362 = arith.truncf %354 : vector<2x32xf32> to vector<2x32xbf16>
    %cst_128 = arith.constant dense<0.000000e+00> : vector<2x128xf32>
    %363 = tpu.matmul %362, %296, %cst_128 {dimension_numbers = #tpu.dot_dimension_numbers<[1], [0], [0], [1], [0, 0, 1, 1], [], []>} : vector<2x32xbf16>, vector<32x128xbf16>, vector<2x128xf32> -> vector<2x128xf32>
    %364 = arith.addf %361, %363 : vector<2x128xf32>
    %365 = math.tanh %364 : vector<2x128xf32>
    %366 = arith.negf %364 : vector<2x128xf32>
    %367 = math.exp %366 : vector<2x128xf32>
    %cst_129 = arith.constant 1.000000e+00 : f32
    %368 = vector.broadcast %cst_129 : f32 to vector<2x128xf32>
    %369 = arith.addf %368, %367 : vector<2x128xf32>
    %370 = arith.divf %368, %369 : vector<2x128xf32>
    %371 = arith.select %302, %365, %370 : vector<2x128xi1>, vector<2x128xf32>
    %372 = vector.extract_strided_slice %371 {offsets = [0, 0], sizes = [2, 32], strides = [1, 1]} : vector<2x128xf32> to vector<2x32xf32>
    %373 = vector.extract_strided_slice %371 {offsets = [0, 32], sizes = [2, 32], strides = [1, 1]} : vector<2x128xf32> to vector<2x32xf32>
    %374 = vector.extract_strided_slice %371 {offsets = [0, 64], sizes = [2, 32], strides = [1, 1]} : vector<2x128xf32> to vector<2x32xf32>
    %375 = vector.extract_strided_slice %371 {offsets = [0, 96], sizes = [2, 32], strides = [1, 1]} : vector<2x128xf32> to vector<2x32xf32>
    %376 = arith.mulf %373, %352 : vector<2x32xf32>
    %377 = arith.mulf %372, %374 : vector<2x32xf32>
    %378 = arith.addf %376, %377 : vector<2x32xf32>
    %379 = math.tanh %378 : vector<2x32xf32>
    %380 = arith.mulf %375, %379 : vector<2x32xf32>
    %c1_i32_130 = arith.constant 1 : i32
    %381 = arith.addi %c2_i32_125, %c1_i32_130 : i32
    %c2_i32_131 = arith.constant 2 : i32
    %382 = arith.muli %381, %c2_i32_131 : i32
    %383 = arith.index_cast %382 : i32 to index
    %c0_132 = arith.constant 0 : index
    %384 = vector.load %arg16[%383, %c0_132] : memref<12x32xf32, #tpu.memory_space<vmem>>, vector<2x32xf32>
    tpu.vector_store %arg16[%383, %c0_132], %380 {strides = array<i32>} : memref<12x32xf32, #tpu.memory_space<vmem>>, vector<2x32xf32>,
    %c3_i32_133 = arith.constant 3 : i32
    %385 = arith.index_cast %c3_i32_133 : i32 to index
    %c0_134 = arith.constant 0 : index
    %c0_135 = arith.constant 0 : index
    %386 = vector.load %arg9[%385, %c0_134, %c0_135] : memref<5x2x128xf32, #tpu.memory_space<vmem>>, vector<1x2x128xf32>
    %387 = vector.shape_cast %386 : vector<1x2x128xf32> to vector<2x128xf32>
    %388 = arith.truncf %380 : vector<2x32xf32> to vector<2x32xbf16>
    %cst_136 = arith.constant dense<0.000000e+00> : vector<2x128xf32>
    %389 = tpu.matmul %388, %296, %cst_136 {dimension_numbers = #tpu.dot_dimension_numbers<[1], [0], [0], [1], [0, 0, 1, 1], [], []>} : vector<2x32xbf16>, vector<32x128xbf16>, vector<2x128xf32> -> vector<2x128xf32>
    %390 = arith.addf %387, %389 : vector<2x128xf32>
    %391 = math.tanh %390 : vector<2x128xf32>
    %392 = arith.negf %390 : vector<2x128xf32>
    %393 = math.exp %392 : vector<2x128xf32>
    %cst_137 = arith.constant 1.000000e+00 : f32
    %394 = vector.broadcast %cst_137 : f32 to vector<2x128xf32>
    %395 = arith.addf %394, %393 : vector<2x128xf32>
    %396 = arith.divf %394, %395 : vector<2x128xf32>
    %397 = arith.select %302, %391, %396 : vector<2x128xi1>, vector<2x128xf32>
    %398 = vector.extract_strided_slice %397 {offsets = [0, 0], sizes = [2, 32], strides = [1, 1]} : vector<2x128xf32> to vector<2x32xf32>
    %399 = vector.extract_strided_slice %397 {offsets = [0, 32], sizes = [2, 32], strides = [1, 1]} : vector<2x128xf32> to vector<2x32xf32>
    %400 = vector.extract_strided_slice %397 {offsets = [0, 64], sizes = [2, 32], strides = [1, 1]} : vector<2x128xf32> to vector<2x32xf32>
    %401 = vector.extract_strided_slice %397 {offsets = [0, 96], sizes = [2, 32], strides = [1, 1]} : vector<2x128xf32> to vector<2x32xf32>
    %402 = arith.mulf %399, %378 : vector<2x32xf32>
    %403 = arith.mulf %398, %400 : vector<2x32xf32>
    %404 = arith.addf %402, %403 : vector<2x32xf32>
    %405 = math.tanh %404 : vector<2x32xf32>
    %406 = arith.mulf %401, %405 : vector<2x32xf32>
    %c1_i32_138 = arith.constant 1 : i32
    %407 = arith.addi %c3_i32_133, %c1_i32_138 : i32
    %c2_i32_139 = arith.constant 2 : i32
    %408 = arith.muli %407, %c2_i32_139 : i32
    %409 = arith.index_cast %408 : i32 to index
    %c0_140 = arith.constant 0 : index
    %410 = vector.load %arg16[%409, %c0_140] : memref<12x32xf32, #tpu.memory_space<vmem>>, vector<2x32xf32>
    tpu.vector_store %arg16[%409, %c0_140], %406 {strides = array<i32>} : memref<12x32xf32, #tpu.memory_space<vmem>>, vector<2x32xf32>,
    %c4_i32_141 = arith.constant 4 : i32
    %411 = arith.index_cast %c4_i32_141 : i32 to index
    %c0_142 = arith.constant 0 : index
    %c0_143 = arith.constant 0 : index
    %412 = vector.load %arg9[%411, %c0_142, %c0_143] : memref<5x2x128xf32, #tpu.memory_space<vmem>>, vector<1x2x128xf32>
    %413 = vector.shape_cast %412 : vector<1x2x128xf32> to vector<2x128xf32>
    %414 = arith.truncf %406 : vector<2x32xf32> to vector<2x32xbf16>
    %cst_144 = arith.constant dense<0.000000e+00> : vector<2x128xf32>
    %415 = tpu.matmul %414, %296, %cst_144 {dimension_numbers = #tpu.dot_dimension_numbers<[1], [0], [0], [1], [0, 0, 1, 1], [], []>} : vector<2x32xbf16>, vector<32x128xbf16>, vector<2x128xf32> -> vector<2x128xf32>
    %416 = arith.addf %413, %415 : vector<2x128xf32>
    %417 = math.tanh %416 : vector<2x128xf32>
    %418 = arith.negf %416 : vector<2x128xf32>
    %419 = math.exp %418 : vector<2x128xf32>
    %cst_145 = arith.constant 1.000000e+00 : f32
    %420 = vector.broadcast %cst_145 : f32 to vector<2x128xf32>
    %421 = arith.addf %420, %419 : vector<2x128xf32>
    %422 = arith.divf %420, %421 : vector<2x128xf32>
    %423 = arith.select %302, %417, %422 : vector<2x128xi1>, vector<2x128xf32>
    %424 = vector.extract_strided_slice %423 {offsets = [0, 0], sizes = [2, 32], strides = [1, 1]} : vector<2x128xf32> to vector<2x32xf32>
    %425 = vector.extract_strided_slice %423 {offsets = [0, 32], sizes = [2, 32], strides = [1, 1]} : vector<2x128xf32> to vector<2x32xf32>
    %426 = vector.extract_strided_slice %423 {offsets = [0, 64], sizes = [2, 32], strides = [1, 1]} : vector<2x128xf32> to vector<2x32xf32>
    %427 = vector.extract_strided_slice %423 {offsets = [0, 96], sizes = [2, 32], strides = [1, 1]} : vector<2x128xf32> to vector<2x32xf32>
    %428 = arith.mulf %425, %404 : vector<2x32xf32>
    %429 = arith.mulf %424, %426 : vector<2x32xf32>
    %430 = arith.addf %428, %429 : vector<2x32xf32>
    %431 = math.tanh %430 : vector<2x32xf32>
    %432 = arith.mulf %427, %431 : vector<2x32xf32>
    %c1_i32_146 = arith.constant 1 : i32
    %433 = arith.addi %c4_i32_141, %c1_i32_146 : i32
    %c2_i32_147 = arith.constant 2 : i32
    %434 = arith.muli %433, %c2_i32_147 : i32
    %435 = arith.index_cast %434 : i32 to index
    %c0_148 = arith.constant 0 : index
    %436 = vector.load %arg16[%435, %c0_148] : memref<12x32xf32, #tpu.memory_space<vmem>>, vector<2x32xf32>
    tpu.vector_store %arg16[%435, %c0_148], %432 {strides = array<i32>} : memref<12x32xf32, #tpu.memory_space<vmem>>, vector<2x32xf32>,
    %c5_i32_149 = arith.constant 5 : i32
    %c0_150 = arith.constant 0 : index
    %c0_151 = arith.constant 0 : index
    %437 = vector.load %arg14[%c0_150, %c0_151] : memref<16x32xf32, #tpu.memory_space<vmem>>, vector<16x32xf32>
    %438 = arith.truncf %437 : vector<16x32xf32> to vector<16x32xbf16>
    %c0_152 = arith.constant 0 : index
    %c0_153 = arith.constant 0 : index
    %439 = vector.load %arg15[%c0_152, %c0_153] : memref<16x32xf32, #tpu.memory_space<vmem>>, vector<16x32xf32>
    %440 = arith.truncf %439 : vector<16x32xf32> to vector<16x32xbf16>
    %c0_154 = arith.constant 0 : index
    %c0_155 = arith.constant 0 : index
    %441 = vector.load %arg16[%c0_154, %c0_155] : memref<12x32xf32, #tpu.memory_space<vmem>>, vector<12x32xf32>
    %442 = arith.truncf %441 : vector<12x32xf32> to vector<12x32xbf16>
    %c0_156 = arith.constant 0 : index
    %c0_157 = arith.constant 0 : index
    %443 = vector.load %arg11[%c0_156, %c0_157] : memref<32x32xbf16, #tpu.memory_space<vmem>>, vector<32x32xbf16>
    %cst_158 = arith.constant dense<0.000000e+00> : vector<16x32xf32>
    %444 = tpu.matmul %438, %443, %cst_158 {dimension_numbers = #tpu.dot_dimension_numbers<[1], [0], [0], [1], [0, 0, 1, 1], [], []>} : vector<16x32xbf16>, vector<32x32xbf16>, vector<16x32xf32> -> vector<16x32xf32>
    %c0_159 = arith.constant 0 : index
    %c0_160 = arith.constant 0 : index
    %445 = vector.load %arg12[%c0_159, %c0_160] : memref<32x32xbf16, #tpu.memory_space<vmem>>, vector<32x32xbf16>
    %cst_161 = arith.constant dense<0.000000e+00> : vector<16x32xf32>
    %446 = tpu.matmul %440, %445, %cst_161 {dimension_numbers = #tpu.dot_dimension_numbers<[1], [0], [0], [1], [0, 0, 1, 1], [], []>} : vector<16x32xbf16>, vector<32x32xbf16>, vector<16x32xf32> -> vector<16x32xf32>
    %447 = arith.addf %444, %446 : vector<16x32xf32>
    %448 = arith.truncf %447 : vector<16x32xf32> to vector<16x32xbf16>
    %cst_162 = arith.constant dense<0.000000e+00> : vector<16x12xf32>
    %449 = tpu.matmul %448, %442, %cst_162 {dimension_numbers = #tpu.dot_dimension_numbers<[1], [1], [0], [0], [0, 0, 1, 0], [], []>} : vector<16x32xbf16>, vector<12x32xbf16>, vector<16x12xf32> -> vector<16x12xf32>
    %c0_163 = arith.constant 0 : index
    %c0_164 = arith.constant 0 : index
    %450 = vector.load %arg2[%c0_163, %c0_164] : memref<16x12xf32, #tpu.memory_space<vmem>>, vector<16x12xf32>
    %cst_165 = arith.constant 5.000000e-01 : f32
    %451 = vector.broadcast %cst_165 : f32 to vector<16x12xf32>
    %452 = arith.cmpf ogt, %450, %451 : vector<16x12xf32>
    %cst_166 = arith.constant -1.000000e+30 : f32
    %453 = vector.broadcast %cst_166 : f32 to vector<16x12xf32>
    %454 = arith.select %452, %449, %453 : vector<16x12xi1>, vector<16x12xf32>
    %cst_167 = arith.constant dense<0xFF800000> : vector<12xf32>
    %455 = vector.multi_reduction <maximumf>, %454, %cst_167 [0] : vector<16x12xf32> to vector<12xf32>
    %456 = vector.shape_cast %455 : vector<12xf32> to vector<1x12xf32>
    %457 = vector.broadcast %456 : vector<1x12xf32> to vector<16x12xf32>
    %458 = arith.subf %454, %457 : vector<16x12xf32>
    %459 = math.exp %458 : vector<16x12xf32>
    %cst_168 = arith.constant dense<0.000000e+00> : vector<12xf32>
    %460 = vector.multi_reduction <add>, %459, %cst_168 [0] : vector<16x12xf32> to vector<12xf32>
    %461 = vector.shape_cast %460 : vector<12xf32> to vector<1x12xf32>
    %462 = tpu.reciprocal %461 {approx = true} : vector<1x12xf32> -> vector<1x12xf32>
    %463 = vector.broadcast %462 : vector<1x12xf32> to vector<16x12xf32>
    %464 = arith.mulf %459, %463 : vector<16x12xf32>
    %465 = arith.truncf %38 : vector<16x12xf32> to vector<16x12xbf16>
    %c0_169 = arith.constant 0 : index
    %c0_170 = arith.constant 0 : index
    %466 = vector.load %arg1[%c0_169, %c0_170] : memref<12x12xbf16, #tpu.memory_space<vmem>>, vector<12x12xbf16>
    %cst_171 = arith.constant dense<0.000000e+00> : vector<16x12xf32>
    %467 = tpu.matmul %465, %466, %cst_171 {dimension_numbers = #tpu.dot_dimension_numbers<[1], [0], [0], [1], [0, 0, 1, 1], [], []>} : vector<16x12xbf16>, vector<12x12xbf16>, vector<16x12xf32> -> vector<16x12xf32>
    %468 = arith.mulf %467, %464 : vector<16x12xf32>
    %cst_172 = arith.constant dense<0.000000e+00> : vector<12xf32>
    %469 = vector.multi_reduction <add>, %468, %cst_172 [0] : vector<16x12xf32> to vector<12xf32>
    %470 = vector.shape_cast %469 : vector<12xf32> to vector<1x12xf32>
    %471 = math.log %470 : vector<1x12xf32>
    %472 = vector.shape_cast %471 : vector<1x12xf32> to vector<1x1x12xf32>
    %cst_173 = arith.constant dense<0.000000e+00> : vector<1xf32>
    %473 = vector.multi_reduction <add>, %472, %cst_173 [1, 2] : vector<1x1x12xf32> to vector<1xf32>
    %474 = vector.shape_cast %473 : vector<1xf32> to vector<1x1x1xf32>
    %475 = vector.extract %474[0, 0, 0] : f32 from vector<1x1x1xf32>
    %cst_174 = arith.constant 0.000000e+00 : f32
    %476 = arith.subf %cst_174, %475 : f32
    %477 = vector.broadcast %476 : f32 to vector<1x1xf32>
    %c0_175 = arith.constant 0 : index
    %c0_176 = arith.constant 0 : index
    %478 = vector.load %arg13[%c0_175, %c0_176] : memref<1x1xf32, #tpu.memory_space<vmem>>, vector<1x1xf32>
    tpu.vector_store %arg13[%c0_175, %c0_176], %477 {strides = array<i32>} : memref<1x1xf32, #tpu.memory_space<vmem>>, vector<1x1xf32>,
    return
  }
}

</mosaic_0001>

<llo_original>
// kernel: forward.1
$region0: #{forward.1}
  #allocation0 [shape = 'u32[]', space=smem, size = 0x4, offset = 0x4, fixed_abs, tag = 'smem constant byte address 0x4 - core index']
  #allocation1 [shape = 'u32[144,128]{1,0:T(1,128)}', space=vmem, size = 0x12000, scoped, tag = 'internal scratch']
  #allocation2 [shape = 'f32[16,32]{1,0:T(8,128)}', space=vmem, size = 0x2000, scoped, tag = 'scratch operand']
  #allocation3 [shape = 'f32[16,32]{1,0:T(8,128)}', space=vmem, size = 0x2000, scoped, tag = 'scratch operand']
  #allocation4 [shape = 'f32[12,32]{1,0:T(8,128)}', space=vmem, size = 0x2000, scoped, tag = 'scratch operand']
  %s0 = inlined_call_operand.vmem [shape: bf16[3,16,6], index: 0, kind: input, shape index: {}]
  %s1 = inlined_call_operand.vmem [shape: bf16[12,12], index: 1, kind: input, shape index: {}]
  %s2 = inlined_call_operand.vmem [shape: f32[16,12], index: 2, kind: input, shape index: {}]
  %s3 = inlined_call_operand.vmem [shape: bf16[3,6,16], index: 3, kind: input, shape index: {}]
  %s4 = inlined_call_operand.vmem [shape: f32[1,16], index: 4, kind: input, shape index: {}]
  %s5 = inlined_call_operand.vmem [shape: bf16[16,12], index: 5, kind: input, shape index: {}]
  %s6 = inlined_call_operand.vmem [shape: f32[1,12], index: 6, kind: input, shape index: {}]
  %s7 = inlined_call_operand.vmem [shape: f32[8,4,128], index: 7, kind: input, shape index: {}]
  %s8 = inlined_call_operand.vmem [shape: bf16[32,128], index: 8, kind: input, shape index: {}]
  %s9 = inlined_call_operand.vmem [shape: f32[5,2,128], index: 9, kind: input, shape index: {}]
  %s10 = inlined_call_operand.vmem [shape: bf16[32,128], index: 10, kind: input, shape index: {}]
  %s11 = inlined_call_operand.vmem [shape: bf16[32,32], index: 11, kind: input, shape index: {}]
  %s12 = inlined_call_operand.vmem [shape: bf16[32,32], index: 12, kind: input, shape index: {}]
  %s13 = inlined_call_operand.hbm [shape: f32[1,1], index: 13, kind: output, shape index: {}]
  %s14 = sld [smem:[#allocation0]]
  $region62: #{forward.1} parent=0
    _
  %s16 = ssub.s32 1, %s14
  %s17 = scalar_select 0, %s16, %s14
  $region1: #{forward.1} parent=0
    #allocation5 [shape = 'u8[512]{0}', space=vmem, size = 0x400, scoped, tag = 'output window, operand 0, single buffered']
    #allocation6 [shape = 's32[1]{0}', space=sflag, size = 0x4, scoped, tag = 'scoped memory for forward.1']
    %18 = vsyncpa [#allocation6], 0
    // Predicated region
    $region2: #{forward.1} parent=1 // pred_check
      _
    $region3: #{forward.1} parent=1 // pred_check_branch
      %20 = sbr.rel (0) target = $region5
    $region4: #{forward.1} parent=1 // pred_region
      _
    $region5: #{forward.1} parent=1 // pred_fallthru
      _
    // Predicated region
    $region6: #{forward.1} parent=1 // pred_check
      _
    $region7: #{forward.1} parent=1 // pred_check_branch
      %22 = sbr.rel (0) target = $region9
    $region8: #{forward.1} parent=1 // pred_region
      _
    $region9: #{forward.1} parent=1 // pred_fallthru
      _
    // Predicated region
    $region10: #{forward.1} parent=1 // pred_check
      _
    $region11: #{forward.1} parent=1 // pred_check_branch
      %24 = sbr.rel (0) target = $region13
    $region12: #{forward.1} parent=1 // pred_region
      _
    $region13: #{forward.1} parent=1 // pred_fallthru
      _
    // Predicated region
    $region14: #{forward.1} parent=1 // pred_check
      _
    $region15: #{forward.1} parent=1 // pred_check_branch
      %26 = sbr.rel (0) target = $region17
    $region16: #{forward.1} parent=1 // pred_region
      _
    $region17: #{forward.1} parent=1 // pred_fallthru
      _
    // Predicated region
    $region18: #{forward.1} parent=1 // pred_check
      _
    $region19: #{forward.1} parent=1 // pred_check_branch
      %28 = sbr.rel (0) target = $region21
    $region20: #{forward.1} parent=1 // pred_region
      _
    $region21: #{forward.1} parent=1 // pred_fallthru
      _
    // Predicated region
    $region22: #{forward.1} parent=1 // pred_check
      _
    $region23: #{forward.1} parent=1 // pred_check_branch
      %30 = sbr.rel (0) target = $region25
    $region24: #{forward.1} parent=1 // pred_region
      _
    $region25: #{forward.1} parent=1 // pred_fallthru
      _
    // Predicated region
    $region26: #{forward.1} parent=1 // pred_check
      _
    $region27: #{forward.1} parent=1 // pred_check_branch
      %32 = sbr.rel (0) target = $region29
    $region28: #{forward.1} parent=1 // pred_region
      _
    $region29: #{forward.1} parent=1 // pred_fallthru
      _
    // Predicated region
    $region30: #{forward.1} parent=1 // pred_check
      _
    $region31: #{forward.1} parent=1 // pred_check_branch
      %34 = sbr.rel (0) target = $region33
    $region32: #{forward.1} parent=1 // pred_region
      _
    $region33: #{forward.1} parent=1 // pred_fallthru
      _
    // Predicated region
    $region34: #{forward.1} parent=1 // pred_check
      _
    $region35: #{forward.1} parent=1 // pred_check_branch
      %36 = sbr.rel (0) target = $region37
    $region36: #{forward.1} parent=1 // pred_region
      _
    $region37: #{forward.1} parent=1 // pred_fallthru
      _
    // Predicated region
    $region38: #{forward.1} parent=1 // pred_check
      _
    $region39: #{forward.1} parent=1 // pred_check_branch
      %38 = sbr.rel (0) target = $region41
    $region40: #{forward.1} parent=1 // pred_region
      _
    $region41: #{forward.1} parent=1 // pred_fallthru
      _
    // Predicated region
    $region42: #{forward.1} parent=1 // pred_check
      _
    $region43: #{forward.1} parent=1 // pred_check_branch
      %40 = sbr.rel (0) target = $region45
    $region44: #{forward.1} parent=1 // pred_region
      _
    $region45: #{forward.1} parent=1 // pred_fallthru
      _
    // Predicated region
    $region46: #{forward.1} parent=1 // pred_check
      _
    $region47: #{forward.1} parent=1 // pred_check_branch
      %42 = sbr.rel (0) target = $region49
    $region48: #{forward.1} parent=1 // pred_region
      _
    $region49: #{forward.1} parent=1 // pred_fallthru
      _
    // Predicated region
    $region50: #{forward.1} parent=1 // pred_check
      _
    $region51: #{forward.1} parent=1 // pred_check_branch
      %44 = sbr.rel (0) target = $region53
    $region52: #{forward.1} parent=1 // pred_region
      _
    $region53: #{forward.1} parent=1 // pred_fallthru
      _
    %v46 = vld [vmem:[%s0] sm:$0xf]
    %v47 = vld [vmem:[%s0 + $0x4] sm:$0xf]
    %v48 = vld [vmem:[%s3] sm:$0x7]
    %s49 = scalar_lea.vmem %s0, 8
    %v50 = vld [vmem:[%s49] sm:$0xf]
    %v51 = vld [vmem:[%s49 + $0x4] sm:$0xf]
    %s52 = scalar_lea.vmem %s3, 4
    %v53 = vld [vmem:[%s52] sm:$0x7]
    %v56 = vunpack.c.l.b16 %v50
    %v57 = vunpack.c.l.b16 %v51
    %v58 = vpack.c.b16 %v57, %v56
    %vm59 = vcmask 48128
    %v61 = vsel %vm59, %v58, 0
    %vm63 = vcmask 1042432
    %v65 = vsel %vm63, %v53, 0
    %67 = vmatprep.subr.bf16.mxu0 0
    %68 = vmatpush1.bf16.msra.mxu0 %v65
    %69 = vmatprep.subr.bf16.mxu0 0
    %70 = vmatpush1.bf16.msra.mxu0 0
    %71 = vmatprep.subr.bf16.mxu0 0
    %72 = vmatpush1.bf16.msra.mxu0 0
    %73 = vmatprep.subr.bf16.mxu0 0
    %74 = vmatpush1.bf16.msra.mxu0 0
    %75 = vmatprep.subr.bf16.mxu0 0
    %76 = vmatpush1.bf16.msra.mxu0 0
    %77 = vmatprep.subr.bf16.mxu0 0
    %78 = vmatpush1.bf16.msra.mxu0 0
    %79 = vmatprep.subr.bf16.mxu0 0
    %80 = vmatpush1.bf16.msra.mxu0 0
    %81 = vmatprep.subr.bf16.mxu0 0
    %82 = vmatpush1.bf16.msra.mxu0 0
    %83 = vmatprep.subr.bf16.mxu0 0
    %84 = vmatpush1.bf16.msra.mxu0 0
    %85 = vmatprep.subr.bf16.mxu0 0
    %86 = vmatpush1.bf16.msra.mxu0 0
    %87 = vmatprep.subr.bf16.mxu0 0
    %88 = vmatpush1.bf16.msra.mxu0 0
    %89 = vmatprep.subr.bf16.mxu0 0
    %90 = vmatpush1.bf16.msra.mxu0 0
    %91 = vmatprep.subr.bf16.mxu0 0
    %92 = vmatpush1.bf16.msra.mxu0 0
    %93 = vmatprep.subr.bf16.mxu0 0
    %94 = vmatpush1.bf16.msra.mxu0 0
    %95 = vmatprep.subr.bf16.mxu0 0
    %96 = vmatpush1.bf16.msra.mxu0 0
    %97 = vmatprep.subr.bf16.mxu0 0
    %98 = vmatpush1.bf16.msra.mxu0 0
    %99 = vmatprep.mubr.bf16.mxu0 0
    %100 = vmatmul.mubr.bf16.gmra.mrb[0].mxu0 %v61
    %v101 = vpop.f32.mrb[0].mxu0
    %v102 = vadd.f32 0.0, %v101
    %v103 = vpop.f32.mrb[0].mxu0
    %v104 = vpop.f32.mrb[0].mxu0
    %v105 = vadd.f32 0.0, %v104
    %v106 = vpop.f32.mrb[0].mxu0
    %107 = vdwg.mxu0
    %v110 = vunpack.c.l.b16 %v46
    %v111 = vunpack.c.l.b16 %v47
    %v112 = vpack.c.b16 %v111, %v110
    %v114 = vsel %vm59, %v112, 0
    %v117 = vsel %vm63, %v48, 0
    %119 = vmatprep.subr.bf16.mxu0 0
    %120 = vmatpush1.bf16.msra.mxu0 %v117
    %121 = vmatprep.subr.bf16.mxu0 0
    %122 = vmatpush1.bf16.msra.mxu0 0
    %123 = vmatprep.subr.bf16.mxu0 0
    %124 = vmatpush1.bf16.msra.mxu0 0
    %125 = vmatprep.subr.bf16.mxu0 0
    %126 = vmatpush1.bf16.msra.mxu0 0
    %127 = vmatprep.subr.bf16.mxu0 0
    %128 = vmatpush1.bf16.msra.mxu0 0
    %129 = vmatprep.subr.bf16.mxu0 0
    %130 = vmatpush1.bf16.msra.mxu0 0
    %131 = vmatprep.subr.bf16.mxu0 0
    %132 = vmatpush1.bf16.msra.mxu0 0
    %133 = vmatprep.subr.bf16.mxu0 0
    %134 = vmatpush1.bf16.msra.mxu0 0
    %135 = vmatprep.subr.bf16.mxu0 0
    %136 = vmatpush1.bf16.msra.mxu0 0
    %137 = vmatprep.subr.bf16.mxu0 0
    %138 = vmatpush1.bf16.msra.mxu0 0
    %139 = vmatprep.subr.bf16.mxu0 0
    %140 = vmatpush1.bf16.msra.mxu0 0
    %141 = vmatprep.subr.bf16.mxu0 0
    %142 = vmatpush1.bf16.msra.mxu0 0
    %143 = vmatprep.subr.bf16.mxu0 0
    %144 = vmatpush1.bf16.msra.mxu0 0
    %145 = vmatprep.subr.bf16.mxu0 0
    %146 = vmatpush1.bf16.msra.mxu0 0
    %147 = vmatprep.subr.bf16.mxu0 0
    %148 = vmatpush1.bf16.msra.mxu0 0
    %149 = vmatprep.subr.bf16.mxu0 0
    %150 = vmatpush1.bf16.msra.mxu0 0
    %151 = vmatprep.mubr.bf16.mxu0 0
    %152 = vmatmul.mubr.bf16.gmra.mrb[0].mxu0 %v114
    %v153 = vpop.f32.mrb[0].mxu0
    %v154 = vadd.f32 %v102, %v153
    %v155 = vpop.f32.mrb[0].mxu0
    %v156 = vpop.f32.mrb[0].mxu0
    %v157 = vadd.f32 %v105, %v156
    %v158 = vpop.f32.mrb[0].mxu0
    %159 = vdwg.mxu0
    %s160 = scalar_lea.vmem %s0, 16
    %v161 = vld [vmem:[%s160] sm:$0xf]
    %v162 = vld [vmem:[%s160 + $0x4] sm:$0xf]
    %s163 = scalar_lea.vmem %s3, 8
    %v164 = vld [vmem:[%s163] sm:$0x7]
    %v167 = vunpack.c.l.b16 %v161
    %v168 = vunpack.c.l.b16 %v162
    %v169 = vpack.c.b16 %v168, %v167
    %v171 = vsel %vm59, %v169, 0
    %v174 = vsel %vm63, %v164, 0
    %176 = vmatprep.subr.bf16.mxu0 0
    %177 = vmatpush1.bf16.msra.mxu0 %v174
    %178 = vmatprep.subr.bf16.mxu0 0
    %179 = vmatpush1.bf16.msra.mxu0 0
    %180 = vmatprep.subr.bf16.mxu0 0
    %181 = vmatpush1.bf16.msra.mxu0 0
    %182 = vmatprep.subr.bf16.mxu0 0
    %183 = vmatpush1.bf16.msra.mxu0 0
    %184 = vmatprep.subr.bf16.mxu0 0
    %185 = vmatpush1.bf16.msra.mxu0 0
    %186 = vmatprep.subr.bf16.mxu0 0
    %187 = vmatpush1.bf16.msra.mxu0 0
    %188 = vmatprep.subr.bf16.mxu0 0
    %189 = vmatpush1.bf16.msra.mxu0 0
    %190 = vmatprep.subr.bf16.mxu0 0
    %191 = vmatpush1.bf16.msra.mxu0 0
    %192 = vmatprep.subr.bf16.mxu0 0
    %193 = vmatpush1.bf16.msra.mxu0 0
    %194 = vmatprep.subr.bf16.mxu0 0
    %195 = vmatpush1.bf16.msra.mxu0 0
    %196 = vmatprep.subr.bf16.mxu0 0
    %197 = vmatpush1.bf16.msra.mxu0 0
    %198 = vmatprep.subr.bf16.mxu0 0
    %199 = vmatpush1.bf16.msra.mxu0 0
    %200 = vmatprep.subr.bf16.mxu0 0
    %201 = vmatpush1.bf16.msra.mxu0 0
    %202 = vmatprep.subr.bf16.mxu0 0
    %203 = vmatpush1.bf16.msra.mxu0 0
    %204 = vmatprep.subr.bf16.mxu0 0
    %205 = vmatpush1.bf16.msra.mxu0 0
    %206 = vmatprep.subr.bf16.mxu0 0
    %207 = vmatpush1.bf16.msra.mxu0 0
    %208 = vmatprep.mubr.bf16.mxu0 0
    %209 = vmatmul.mubr.bf16.gmra.mrb[0].mxu0 %v171
    %v210 = vpop.f32.mrb[0].mxu0
    %v211 = vadd.f32 0.0, %v210
    %v212 = vpop.f32.mrb[0].mxu0
    %v213 = vpop.f32.mrb[0].mxu0
    %v214 = vadd.f32 0.0, %v213
    %v215 = vpop.f32.mrb[0].mxu0
    %216 = vdwg.mxu0
    %v217 = vadd.f32 %v154, %v211
    %v218 = vadd.f32 %v157, %v214
    %v219 = vld [vmem:[%s4] sm:$0x1]
    %v221 = vlaneseq
    %v222 = vshrl.u32 %v221, 7
    %v223 = vsub.s32 0, %v222
    %v224 = vrot.slane %v219, %v223
    %v226 = vadd.f32 %v217, %v224
    %v227 = vadd.f32 %v218, %v224
    %v228 = vtanh.pop %v226
    %v229 = vtanh.pop %v227
    %v230 = vpack.c.bf16 %v229, %v228
    %v231 = vld [vmem:[%s5] sm:$0xf]
    %v232 = vld [vmem:[%s5 + $0x4] sm:$0xf]
    %v233 = vld [vmem:[%s6] sm:$0x1]
    %v235 = vlaneseq
    %v236 = vshrl.u32 %v235, 7
    %v237 = vsub.s32 0, %v236
    %v238 = vrot.slane %v233, %v237
    %v242 = vunpack.c.l.b16 %v231
    %v243 = vunpack.c.l.b16 %v232
    %v244 = vpack.c.b16 %v243, %v242
    %vm246 = vcmask 130048
    %v248 = vsel %vm246, %v230, 0
    %250 = vmatprep.subr.bf16.mxu0 0
    %251 = vmatpush1.bf16.msra.mxu0 %v244
    %252 = vmatprep.subr.bf16.mxu0 0
    %253 = vmatpush1.bf16.msra.mxu0 0
    %254 = vmatprep.subr.bf16.mxu0 0
    %255 = vmatpush1.bf16.msra.mxu0 0
    %256 = vmatprep.subr.bf16.mxu0 0
    %257 = vmatpush1.bf16.msra.mxu0 0
    %258 = vmatprep.subr.bf16.mxu0 0
    %259 = vmatpush1.bf16.msra.mxu0 0
    %260 = vmatprep.subr.bf16.mxu0 0
    %261 = vmatpush1.bf16.msra.mxu0 0
    %262 = vmatprep.subr.bf16.mxu0 0
    %263 = vmatpush1.bf16.msra.mxu0 0
    %264 = vmatprep.subr.bf16.mxu0 0
    %265 = vmatpush1.bf16.msra.mxu0 0
    %266 = vmatprep.subr.bf16.mxu0 0
    %267 = vmatpush1.bf16.msra.mxu0 0
    %268 = vmatprep.subr.bf16.mxu0 0
    %269 = vmatpush1.bf16.msra.mxu0 0
    %270 = vmatprep.subr.bf16.mxu0 0
    %271 = vmatpush1.bf16.msra.mxu0 0
    %272 = vmatprep.subr.bf16.mxu0 0
    %273 = vmatpush1.bf16.msra.mxu0 0
    %274 = vmatprep.subr.bf16.mxu0 0
    %275 = vmatpush1.bf16.msra.mxu0 0
    %276 = vmatprep.subr.bf16.mxu0 0
    %277 = vmatpush1.bf16.msra.mxu0 0
    %278 = vmatprep.subr.bf16.mxu0 0
    %279 = vmatpush1.bf16.msra.mxu0 0
    %280 = vmatprep.subr.bf16.mxu0 0
    %281 = vmatpush1.bf16.msra.mxu0 0
    %282 = vmatprep.mubr.bf16.mxu0 0
    %283 = vmatmul.mubr.bf16.gmra.mrb[0].mxu0 %v248
    %v284 = vpop.f32.mrb[0].mxu0
    %v285 = vadd.f32 %v238, %v284
    %v286 = vpop.f32.mrb[0].mxu0
    %v287 = vpop.f32.mrb[0].mxu0
    %v288 = vadd.f32 %v238, %v287
    %v289 = vpop.f32.mrb[0].mxu0
    %290 = vdwg.mxu0
    %vm291 = vcmask 97280
    %v292 = vsel %vm291, %v285, -inf
    %293 = vmax.xlane.f32.xlu0 %v292
    %v294 = vpop.xlane.xlu0 %293
    %v295 = vsel %vm291, %v288, -inf
    %296 = vmax.xlane.f32.xlu0 %v295
    %v297 = vpop.xlane.xlu0 %296
    %v298 = vsub.f32 %v285, %v294
    %v299 = vsub.f32 %v288, %v297
    %v300 = vmul.f32 %v298, 1.442695
    %v301 = vpow.pop %v300
    %v302 = vmul.f32 %v299, 1.442695
    %v303 = vpow.pop %v302
    %v304 = vsel %vm291, %v301, 0.0
    %305 = vadd.xlane.f32.xlu0 %v304
    %v306 = vpop.xlane.xlu0 %305
    %v307 = vsel %vm291, %v303, 0.0
    %308 = vadd.xlane.f32.xlu0 %v307
    %v309 = vpop.xlane.xlu0 %308
    %v310 = vrcp.pop %v306
    %v311 = vrcp.pop %v309
    %v312 = vmul.f32 %v301, %v310
    %v313 = vmul.f32 %v303, %v311
    %v314 = vld [vmem:[%s8] sm:$0xf]
    %v315 = vld [vmem:[%s8 + $0x4] sm:$0xf]
    %v316 = vld [vmem:[%s8 + $0x8] sm:$0xf]
    %v317 = vld [vmem:[%s8 + $0xc] sm:$0xf]
    %v318 = vlaneseq
    %v319 = vand.u32 %v318, 127
    %vm320 = vcmp.ge.s32.totalorder %v319, 64
    %vm321 = vcmp.lt.s32.totalorder %v319, 96
    %vm322 = vmand %vm320, %vm321
    %v323 = vld [vmem:[%s7] sm:$0xf]
    %v328 = vunpack.c.l.b16 %v314
    %v329 = vunpack.c.l.b16 %v315
    %v330 = vunpack.c.l.b16 %v316
    %v331 = vunpack.c.l.b16 %v317
    %v332 = vpack.c.b16 %v329, %v328
    %v333 = vpack.c.b16 %v331, %v330
    %vm336 = vcmask 261120
    %v338 = vsel %vm336, 0, 0
    %340 = vmatprep.subr.bf16.mxu0 0
    %341 = vmatpush1.bf16.msra.mxu0 %v332
    %342 = vmatprep.subr.bf16.mxu0 0
    %343 = vmatpush1.bf16.msra.mxu0 %v333
    %344 = vmatprep.subr.bf16.mxu0 0
    %345 = vmatpush1.bf16.msra.mxu0 0
    %346 = vmatprep.subr.bf16.mxu0 0
    %347 = vmatpush1.bf16.msra.mxu0 0
    %348 = vmatprep.subr.bf16.mxu0 0
    %349 = vmatpush1.bf16.msra.mxu0 0
    %350 = vmatprep.subr.bf16.mxu0 0
    %351 = vmatpush1.bf16.msra.mxu0 0
    %352 = vmatprep.subr.bf16.mxu0 0
    %353 = vmatpush1.bf16.msra.mxu0 0
    %354 = vmatprep.subr.bf16.mxu0 0
    %355 = vmatpush1.bf16.msra.mxu0 0
    %356 = vmatprep.subr.bf16.mxu0 0
    %357 = vmatpush1.bf16.msra.mxu0 0
    %358 = vmatprep.subr.bf16.mxu0 0
    %359 = vmatpush1.bf16.msra.mxu0 0
    %360 = vmatprep.subr.bf16.mxu0 0
    %361 = vmatpush1.bf16.msra.mxu0 0
    %362 = vmatprep.subr.bf16.mxu0 0
    %363 = vmatpush1.bf16.msra.mxu0 0
    %364 = vmatprep.subr.bf16.mxu0 0
    %365 = vmatpush1.bf16.msra.mxu0 0
    %366 = vmatprep.subr.bf16.mxu0 0
    %367 = vmatpush1.bf16.msra.mxu0 0
    %368 = vmatprep.subr.bf16.mxu0 0
    %369 = vmatpush1.bf16.msra.mxu0 0
    %370 = vmatprep.subr.bf16.mxu0 0
    %371 = vmatpush1.bf16.msra.mxu0 0
    %372 = vmatprep.mubr.bf16.mxu0 0
    %373 = vmatmul.mubr.bf16.gmra.mrb[0].mxu0 %v338
    %v374 = vpop.f32.mrb[0].mxu0
    %v375 = vadd.f32 0.0, %v374
    %v376 = vpop.f32.mrb[0].mxu0
    %v377 = vpop.f32.mrb[0].mxu0
    %v378 = vpop.f32.mrb[0].mxu0
    %379 = vdwg.mxu0
    %v380 = vadd.f32 %v323, %v375
    %v381 = vtanh.pop %v380
    %v382 = vxor.u32 %v380, 2147483648
    %v383 = vmul.f32 %v382, 1.442695
    %v384 = vpow.pop %v383
    %v385 = vadd.f32 %v384, 1.0
    %v386 = vrcp.pop %v385
    %v387 = vmul.f32 1.0, %v386
    %v388 = vsel %vm322, %v381, %v387
    %v389 = vmul.f32 %v388, 0.0
    %391 = vrot.lane.b32.xlu0 %v388, 64
    %v392 = vpop.permute.xlu0 %391
    %v394 = vmul.f32 %v388, %v392
    %396 = vrot.lane.b32.xlu0 %v394, 32
    %v397 = vpop.permute.xlu0 %396
    %v399 = vadd.f32 %v389, %v397
    %v400 = vtanh.pop %v399
    %402 = vrot.lane.b32.xlu0 %v400, 64
    %v403 = vpop.permute.xlu0 %402
    %v405 = vmul.f32 %v388, %v403
    %407 = vrot.lane.b32.xlu0 %v405, 32
    %v408 = vpop.permute.xlu0 %407
    %vm410 = vcmask 254976
    %411 = vst.msk [vmem:[#allocation2] sm:$0x3] %vm410, %v408
    %vm412 = vcmask 257026
    %413 = vst.msk [vmem:[#allocation3 + $0xc] sm:$0xc] %vm412, %v408
    %s414 = scalar_lea.vmem %s7, 4
    %v415 = vld [vmem:[%s414] sm:$0xf]
    %v416 = vpack.c.bf16 %v405, %v405
    %418 = vrot.lane.b32.xlu0 %v416, 32
    %v419 = vpop.permute.xlu0 %418
    %v421 = vsel %vm336, %v419, 0
    %423 = vmatprep.subr.bf16.mxu0 0
    %424 = vmatpush1.bf16.msra.mxu0 %v332
    %425 = vmatprep.subr.bf16.mxu0 0
    %426 = vmatpush1.bf16.msra.mxu0 %v333
    %427 = vmatprep.subr.bf16.mxu0 0
    %428 = vmatpush1.bf16.msra.mxu0 0
    %429 = vmatprep.subr.bf16.mxu0 0
    %430 = vmatpush1.bf16.msra.mxu0 0
    %431 = vmatprep.subr.bf16.mxu0 0
    %432 = vmatpush1.bf16.msra.mxu0 0
    %433 = vmatprep.subr.bf16.mxu0 0
    %434 = vmatpush1.bf16.msra.mxu0 0
    %435 = vmatprep.subr.bf16.mxu0 0
    %436 = vmatpush1.bf16.msra.mxu0 0
    %437 = vmatprep.subr.bf16.mxu0 0
    %438 = vmatpush1.bf16.msra.mxu0 0
    %439 = vmatprep.subr.bf16.mxu0 0
    %440 = vmatpush1.bf16.msra.mxu0 0
    %441 = vmatprep.subr.bf16.mxu0 0
    %442 = vmatpush1.bf16.msra.mxu0 0
    %443 = vmatprep.subr.bf16.mxu0 0
    %444 = vmatpush1.bf16.msra.mxu0 0
    %445 = vmatprep.subr.bf16.mxu0 0
    %446 = vmatpush1.bf16.msra.mxu0 0
    %447 = vmatprep.subr.bf16.mxu0 0
    %448 = vmatpush1.bf16.msra.mxu0 0
    %449 = vmatprep.subr.bf16.mxu0 0
    %450 = vmatpush1.bf16.msra.mxu0 0
    %451 = vmatprep.subr.bf16.mxu0 0
    %452 = vmatpush1.bf16.msra.mxu0 0
    %453 = vmatprep.subr.bf16.mxu0 0
    %454 = vmatpush1.bf16.msra.mxu0 0
    %455 = vmatprep.mubr.bf16.mxu0 0
    %456 = vmatmul.mubr.bf16.gmra.mrb[0].mxu0 %v421
    %v457 = vpop.f32.mrb[0].mxu0
    %v458 = vadd.f32 0.0, %v457
    %v459 = vpop.f32.mrb[0].mxu0
    %v460 = vpop.f32.mrb[0].mxu0
    %v461 = vpop.f32.mrb[0].mxu0
    %462 = vdwg.mxu0
    %v463 = vadd.f32 %v415, %v458
    %v464 = vtanh.pop %v463
    %v465 = vxor.u32 %v463, 2147483648
    %v466 = vmul.f32 %v465, 1.442695
    %v467 = vpow.pop %v466
    %v468 = vadd.f32 %v467, 1.0
    %v469 = vrcp.pop %v468
    %v470 = vmul.f32 1.0, %v469
    %v471 = vsel %vm322, %v464, %v470
    %v472 = vmul.f32 %v471, %v399
    %474 = vrot.lane.b32.xlu0 %v471, 64
    %v475 = vpop.permute.xlu0 %474
    %v477 = vmul.f32 %v471, %v475
    %479 = vrot.lane.b32.xlu0 %v477, 32
    %v480 = vpop.permute.xlu0 %479
    %v482 = vadd.f32 %v472, %v480
    %v483 = vtanh.pop %v482
    %485 = vrot.lane.b32.xlu0 %v483, 64
    %v486 = vpop.permute.xlu0 %485
    %v488 = vmul.f32 %v471, %v486
    %490 = vrot.lane.b32.xlu0 %v488, 32
    %v491 = vpop.permute.xlu0 %490
    %493 = vst.msk [vmem:[#allocation2 + $0x2] sm:$0x3] %vm410, %v491
    %494 = vst.msk [vmem:[#allocation3 + $0xa] sm:$0xc] %vm412, %v491
    %s495 = scalar_lea.vmem %s7, 8
    %v496 = vld [vmem:[%s495] sm:$0xf]
    %v497 = vpack.c.bf16 %v488, %v488
    %499 = vrot.lane.b32.xlu0 %v497, 32
    %v500 = vpop.permute.xlu0 %499
    %v502 = vsel %vm336, %v500, 0
    %504 = vmatprep.subr.bf16.mxu0 0
    %505 = vmatpush1.bf16.msra.mxu0 %v332
    %506 = vmatprep.subr.bf16.mxu0 0
    %507 = vmatpush1.bf16.msra.mxu0 %v333
    %508 = vmatprep.subr.bf16.mxu0 0
    %509 = vmatpush1.bf16.msra.mxu0 0
    %510 = vmatprep.subr.bf16.mxu0 0
    %511 = vmatpush1.bf16.msra.mxu0 0
    %512 = vmatprep.subr.bf16.mxu0 0
    %513 = vmatpush1.bf16.msra.mxu0 0
    %514 = vmatprep.subr.bf16.mxu0 0
    %515 = vmatpush1.bf16.msra.mxu0 0
    %516 = vmatprep.subr.bf16.mxu0 0
    %517 = vmatpush1.bf16.msra.mxu0 0
    %518 = vmatprep.subr.bf16.mxu0 0
    %519 = vmatpush1.bf16.msra.mxu0 0
    %520 = vmatprep.subr.bf16.mxu0 0
    %521 = vmatpush1.bf16.msra.mxu0 0
    %522 = vmatprep.subr.bf16.mxu0 0
    %523 = vmatpush1.bf16.msra.mxu0 0
    %524 = vmatprep.subr.bf16.mxu0 0
    %525 = vmatpush1.bf16.msra.mxu0 0
    %526 = vmatprep.subr.bf16.mxu0 0
    %527 = vmatpush1.bf16.msra.mxu0 0
    %528 = vmatprep.subr.bf16.mxu0 0
    %529 = vmatpush1.bf16.msra.mxu0 0
    %530 = vmatprep.subr.bf16.mxu0 0
    %531 = vmatpush1.bf16.msra.mxu0 0
    %532 = vmatprep.subr.bf16.mxu0 0
    %533 = vmatpush1.bf16.msra.mxu0 0
    %534 = vmatprep.subr.bf16.mxu0 0
    %535 = vmatpush1.bf16.msra.mxu0 0
    %536 = vmatprep.mubr.bf16.mxu0 0
    %537 = vmatmul.mubr.bf16.gmra.mrb[0].mxu0 %v502
    %v538 = vpop.f32.mrb[0].mxu0
    %v539 = vadd.f32 0.0, %v538
    %v540 = vpop.f32.mrb[0].mxu0
    %v541 = vpop.f32.mrb[0].mxu0
    %v542 = vpop.f32.mrb[0].mxu0
    %543 = vdwg.mxu0
    %v544 = vadd.f32 %v496, %v539
    %v545 = vtanh.pop %v544
    %v546 = vxor.u32 %v544, 2147483648
    %v547 = vmul.f32 %v546, 1.442695
    %v548 = vpow.pop %v547
    %v549 = vadd.f32 %v548, 1.0
    %v550 = vrcp.pop %v549
    %v551 = vmul.f32 1.0, %v550
    %v552 = vsel %vm322, %v545, %v551
    %v553 = vmul.f32 %v552, %v482
    %555 = vrot.lane.b32.xlu0 %v552, 64
    %v556 = vpop.permute.xlu0 %555
    %v558 = vmul.f32 %v552, %v556
    %560 = vrot.lane.b32.xlu0 %v558, 32
    %v561 = vpop.permute.xlu0 %560
    %v563 = vadd.f32 %v553, %v561
    %v564 = vtanh.pop %v563
    %566 = vrot.lane.b32.xlu0 %v564, 64
    %v567 = vpop.permute.xlu0 %566
    %v569 = vmul.f32 %v552, %v567
    %571 = vrot.lane.b32.xlu0 %v569, 32
    %v572 = vpop.permute.xlu0 %571
    %574 = vst.msk [vmem:[#allocation2 + $0x4] sm:$0x3] %vm410, %v572
    %575 = vst.msk [vmem:[#allocation3 + $0x8] sm:$0xc] %vm412, %v572
    %s576 = scalar_lea.vmem %s7, 12
    %v577 = vld [vmem:[%s576] sm:$0xf]
    %v578 = vpack.c.bf16 %v569, %v569
    %580 = vrot.lane.b32.xlu0 %v578, 32
    %v581 = vpop.permute.xlu0 %580
    %v583 = vsel %vm336, %v581, 0
    %585 = vmatprep.subr.bf16.mxu0 0
    %586 = vmatpush1.bf16.msra.mxu0 %v332
    %587 = vmatprep.subr.bf16.mxu0 0
    %588 = vmatpush1.bf16.msra.mxu0 %v333
    %589 = vmatprep.subr.bf16.mxu0 0
    %590 = vmatpush1.bf16.msra.mxu0 0
    %591 = vmatprep.subr.bf16.mxu0 0
    %592 = vmatpush1.bf16.msra.mxu0 0
    %593 = vmatprep.subr.bf16.mxu0 0
    %594 = vmatpush1.bf16.msra.mxu0 0
    %595 = vmatprep.subr.bf16.mxu0 0
    %596 = vmatpush1.bf16.msra.mxu0 0
    %597 = vmatprep.subr.bf16.mxu0 0
    %598 = vmatpush1.bf16.msra.mxu0 0
    %599 = vmatprep.subr.bf16.mxu0 0
    %600 = vmatpush1.bf16.msra.mxu0 0
    %601 = vmatprep.subr.bf16.mxu0 0
    %602 = vmatpush1.bf16.msra.mxu0 0
    %603 = vmatprep.subr.bf16.mxu0 0
    %604 = vmatpush1.bf16.msra.mxu0 0
    %605 = vmatprep.subr.bf16.mxu0 0
    %606 = vmatpush1.bf16.msra.mxu0 0
    %607 = vmatprep.subr.bf16.mxu0 0
    %608 = vmatpush1.bf16.msra.mxu0 0
    %609 = vmatprep.subr.bf16.mxu0 0
    %610 = vmatpush1.bf16.msra.mxu0 0
    %611 = vmatprep.subr.bf16.mxu0 0
    %612 = vmatpush1.bf16.msra.mxu0 0
    %613 = vmatprep.subr.bf16.mxu0 0
    %614 = vmatpush1.bf16.msra.mxu0 0
    %615 = vmatprep.subr.bf16.mxu0 0
    %616 = vmatpush1.bf16.msra.mxu0 0
    %617 = vmatprep.mubr.bf16.mxu0 0
    %618 = vmatmul.mubr.bf16.gmra.mrb[0].mxu0 %v583
    %v619 = vpop.f32.mrb[0].mxu0
    %v620 = vadd.f32 0.0, %v619
    %v621 = vpop.f32.mrb[0].mxu0
    %v622 = vpop.f32.mrb[0].mxu0
    %v623 = vpop.f32.mrb[0].mxu0
    %624 = vdwg.mxu0
    %v625 = vadd.f32 %v577, %v620
    %v626 = vtanh.pop %v625
    %v627 = vxor.u32 %v625, 2147483648
    %v628 = vmul.f32 %v627, 1.442695
    %v629 = vpow.pop %v628
    %v630 = vadd.f32 %v629, 1.0
    %v631 = vrcp.pop %v630
    %v632 = vmul.f32 1.0, %v631
    %v633 = vsel %vm322, %v626, %v632
    %v634 = vmul.f32 %v633, %v563
    %636 = vrot.lane.b32.xlu0 %v633, 64
    %v637 = vpop.permute.xlu0 %636
    %v639 = vmul.f32 %v633, %v637
    %641 = vrot.lane.b32.xlu0 %v639, 32
    %v642 = vpop.permute.xlu0 %641
    %v644 = vadd.f32 %v634, %v642
    %v645 = vtanh.pop %v644
    %647 = vrot.lane.b32.xlu0 %v645, 64
    %v648 = vpop.permute.xlu0 %647
    %v650 = vmul.f32 %v633, %v648
    %652 = vrot.lane.b32.xlu0 %v650, 32
    %v653 = vpop.permute.xlu0 %652
    %655 = vst.msk [vmem:[#allocation2 + $0x6] sm:$0x3] %vm410, %v653
    %656 = vst.msk [vmem:[#allocation3 + $0x6] sm:$0xc] %vm412, %v653
    %s657 = scalar_lea.vmem %s7, 16
    %v658 = vld [vmem:[%s657] sm:$0xf]
    %v659 = vpack.c.bf16 %v650, %v650
    %661 = vrot.lane.b32.xlu0 %v659, 32
    %v662 = vpop.permute.xlu0 %661
    %v664 = vsel %vm336, %v662, 0
    %666 = vmatprep.subr.bf16.mxu0 0
    %667 = vmatpush1.bf16.msra.mxu0 %v332
    %668 = vmatprep.subr.bf16.mxu0 0
    %669 = vmatpush1.bf16.msra.mxu0 %v333
    %670 = vmatprep.subr.bf16.mxu0 0
    %671 = vmatpush1.bf16.msra.mxu0 0
    %672 = vmatprep.subr.bf16.mxu0 0
    %673 = vmatpush1.bf16.msra.mxu0 0
    %674 = vmatprep.subr.bf16.mxu0 0
    %675 = vmatpush1.bf16.msra.mxu0 0
    %676 = vmatprep.subr.bf16.mxu0 0
    %677 = vmatpush1.bf16.msra.mxu0 0
    %678 = vmatprep.subr.bf16.mxu0 0
    %679 = vmatpush1.bf16.msra.mxu0 0
    %680 = vmatprep.subr.bf16.mxu0 0
    %681 = vmatpush1.bf16.msra.mxu0 0
    %682 = vmatprep.subr.bf16.mxu0 0
    %683 = vmatpush1.bf16.msra.mxu0 0
    %684 = vmatprep.subr.bf16.mxu0 0
    %685 = vmatpush1.bf16.msra.mxu0 0
    %686 = vmatprep.subr.bf16.mxu0 0
    %687 = vmatpush1.bf16.msra.mxu0 0
    %688 = vmatprep.subr.bf16.mxu0 0
    %689 = vmatpush1.bf16.msra.mxu0 0
    %690 = vmatprep.subr.bf16.mxu0 0
    %691 = vmatpush1.bf16.msra.mxu0 0
    %692 = vmatprep.subr.bf16.mxu0 0
    %693 = vmatpush1.bf16.msra.mxu0 0
    %694 = vmatprep.subr.bf16.mxu0 0
    %695 = vmatpush1.bf16.msra.mxu0 0
    %696 = vmatprep.subr.bf16.mxu0 0
    %697 = vmatpush1.bf16.msra.mxu0 0
    %698 = vmatprep.mubr.bf16.mxu0 0
    %699 = vmatmul.mubr.bf16.gmra.mrb[0].mxu0 %v664
    %v700 = vpop.f32.mrb[0].mxu0
    %v701 = vadd.f32 0.0, %v700
    %v702 = vpop.f32.mrb[0].mxu0
    %v703 = vpop.f32.mrb[0].mxu0
    %v704 = vpop.f32.mrb[0].mxu0
    %705 = vdwg.mxu0
    %v706 = vadd.f32 %v658, %v701
    %v707 = vtanh.pop %v706
    %v708 = vxor.u32 %v706, 2147483648
    %v709 = vmul.f32 %v708, 1.442695
    %v710 = vpow.pop %v709
    %v711 = vadd.f32 %v710, 1.0
    %v712 = vrcp.pop %v711
    %v713 = vmul.f32 1.0, %v712
    %v714 = vsel %vm322, %v707, %v713
    %v715 = vmul.f32 %v714, %v644
    %717 = vrot.lane.b32.xlu0 %v714, 64
    %v718 = vpop.permute.xlu0 %717
    %v720 = vmul.f32 %v714, %v718
    %722 = vrot.lane.b32.xlu0 %v720, 32
    %v723 = vpop.permute.xlu0 %722
    %v725 = vadd.f32 %v715, %v723
    %v726 = vtanh.pop %v725
    %728 = vrot.lane.b32.xlu0 %v726, 64
    %v729 = vpop.permute.xlu0 %728
    %v731 = vmul.f32 %v714, %v729
    %733 = vrot.lane.b32.xlu0 %v731, 32
    %v734 = vpop.permute.xlu0 %733
    %736 = vst.msk [vmem:[#allocation2 + $0x8] sm:$0x3] %vm410, %v734
    %737 = vst.msk [vmem:[#allocation3 + $0x4] sm:$0xc] %vm412, %v734
    %s738 = scalar_lea.vmem %s7, 20
    %v739 = vld [vmem:[%s738] sm:$0xf]
    %v740 = vpack.c.bf16 %v731, %v731
    %742 = vrot.lane.b32.xlu0 %v740, 32
    %v743 = vpop.permute.xlu0 %742
    %v745 = vsel %vm336, %v743, 0
    %747 = vmatprep.subr.bf16.mxu0 0
    %748 = vmatpush1.bf16.msra.mxu0 %v332
    %749 = vmatprep.subr.bf16.mxu0 0
    %750 = vmatpush1.bf16.msra.mxu0 %v333
    %751 = vmatprep.subr.bf16.mxu0 0
    %752 = vmatpush1.bf16.msra.mxu0 0
    %753 = vmatprep.subr.bf16.mxu0 0
    %754 = vmatpush1.bf16.msra.mxu0 0
    %755 = vmatprep.subr.bf16.mxu0 0
    %756 = vmatpush1.bf16.msra.mxu0 0
    %757 = vmatprep.subr.bf16.mxu0 0
    %758 = vmatpush1.bf16.msra.mxu0 0
    %759 = vmatprep.subr.bf16.mxu0 0
    %760 = vmatpush1.bf16.msra.mxu0 0
    %761 = vmatprep.subr.bf16.mxu0 0
    %762 = vmatpush1.bf16.msra.mxu0 0
    %763 = vmatprep.subr.bf16.mxu0 0
    %764 = vmatpush1.bf16.msra.mxu0 0
    %765 = vmatprep.subr.bf16.mxu0 0
    %766 = vmatpush1.bf16.msra.mxu0 0
    %767 = vmatprep.subr.bf16.mxu0 0
    %768 = vmatpush1.bf16.msra.mxu0 0
    %769 = vmatprep.subr.bf16.mxu0 0
    %770 = vmatpush1.bf16.msra.mxu0 0
    %771 = vmatprep.subr.bf16.mxu0 0
    %772 = vmatpush1.bf16.msra.mxu0 0
    %773 = vmatprep.subr.bf16.mxu0 0
    %774 = vmatpush1.bf16.msra.mxu0 0
    %775 = vmatprep.subr.bf16.mxu0 0
    %776 = vmatpush1.bf16.msra.mxu0 0
    %777 = vmatprep.subr.bf16.mxu0 0
    %778 = vmatpush1.bf16.msra.mxu0 0
    %779 = vmatprep.mubr.bf16.mxu0 0
    %780 = vmatmul.mubr.bf16.gmra.mrb[0].mxu0 %v745
    %v781 = vpop.f32.mrb[0].mxu0
    %v782 = vadd.f32 0.0, %v781
    %v783 = vpop.f32.mrb[0].mxu0
    %v784 = vpop.f32.mrb[0].mxu0
    %v785 = vpop.f32.mrb[0].mxu0
    %786 = vdwg.mxu0
    %v787 = vadd.f32 %v739, %v782
    %v788 = vtanh.pop %v787
    %v789 = vxor.u32 %v787, 2147483648
    %v790 = vmul.f32 %v789, 1.442695
    %v791 = vpow.pop %v790
    %v792 = vadd.f32 %v791, 1.0
    %v793 = vrcp.pop %v792
    %v794 = vmul.f32 1.0, %v793
    %v795 = vsel %vm322, %v788, %v794
    %v796 = vmul.f32 %v795, %v725
    %798 = vrot.lane.b32.xlu0 %v795, 64
    %v799 = vpop.permute.xlu0 %798
    %v801 = vmul.f32 %v795, %v799
    %803 = vrot.lane.b32.xlu0 %v801, 32
    %v804 = vpop.permute.xlu0 %803
    %v806 = vadd.f32 %v796, %v804
    %v807 = vtanh.pop %v806
    %809 = vrot.lane.b32.xlu0 %v807, 64
    %v810 = vpop.permute.xlu0 %809
    %v812 = vmul.f32 %v795, %v810
    %814 = vrot.lane.b32.xlu0 %v812, 32
    %v815 = vpop.permute.xlu0 %814
    %817 = vst.msk [vmem:[#allocation2 + $0xa] sm:$0x3] %vm410, %v815
    %818 = vst.msk [vmem:[#allocation3 + $0x2] sm:$0xc] %vm412, %v815
    %s819 = scalar_lea.vmem %s7, 24
    %v820 = vld [vmem:[%s819] sm:$0xf]
    %v821 = vpack.c.bf16 %v812, %v812
    %823 = vrot.lane.b32.xlu0 %v821, 32
    %v824 = vpop.permute.xlu0 %823
    %v826 = vsel %vm336, %v824, 0
    %828 = vmatprep.subr.bf16.mxu0 0
    %829 = vmatpush1.bf16.msra.mxu0 %v332
    %830 = vmatprep.subr.bf16.mxu0 0
    %831 = vmatpush1.bf16.msra.mxu0 %v333
    %832 = vmatprep.subr.bf16.mxu0 0
    %833 = vmatpush1.bf16.msra.mxu0 0
    %834 = vmatprep.subr.bf16.mxu0 0
    %835 = vmatpush1.bf16.msra.mxu0 0
    %836 = vmatprep.subr.bf16.mxu0 0
    %837 = vmatpush1.bf16.msra.mxu0 0
    %838 = vmatprep.subr.bf16.mxu0 0
    %839 = vmatpush1.bf16.msra.mxu0 0
    %840 = vmatprep.subr.bf16.mxu0 0
    %841 = vmatpush1.bf16.msra.mxu0 0
    %842 = vmatprep.subr.bf16.mxu0 0
    %843 = vmatpush1.bf16.msra.mxu0 0
    %844 = vmatprep.subr.bf16.mxu0 0
    %845 = vmatpush1.bf16.msra.mxu0 0
    %846 = vmatprep.subr.bf16.mxu0 0
    %847 = vmatpush1.bf16.msra.mxu0 0
    %848 = vmatprep.subr.bf16.mxu0 0
    %849 = vmatpush1.bf16.msra.mxu0 0
    %850 = vmatprep.subr.bf16.mxu0 0
    %851 = vmatpush1.bf16.msra.mxu0 0
    %852 = vmatprep.subr.bf16.mxu0 0
    %853 = vmatpush1.bf16.msra.mxu0 0
    %854 = vmatprep.subr.bf16.mxu0 0
    %855 = vmatpush1.bf16.msra.mxu0 0
    %856 = vmatprep.subr.bf16.mxu0 0
    %857 = vmatpush1.bf16.msra.mxu0 0
    %858 = vmatprep.subr.bf16.mxu0 0
    %859 = vmatpush1.bf16.msra.mxu0 0
    %860 = vmatprep.mubr.bf16.mxu0 0
    %861 = vmatmul.mubr.bf16.gmra.mrb[0].mxu0 %v826
    %v862 = vpop.f32.mrb[0].mxu0
    %v863 = vadd.f32 0.0, %v862
    %v864 = vpop.f32.mrb[0].mxu0
    %v865 = vpop.f32.mrb[0].mxu0
    %v866 = vpop.f32.mrb[0].mxu0
    %867 = vdwg.mxu0
    %v868 = vadd.f32 %v820, %v863
    %v869 = vtanh.pop %v868
    %v870 = vxor.u32 %v868, 2147483648
    %v871 = vmul.f32 %v870, 1.442695
    %v872 = vpow.pop %v871
    %v873 = vadd.f32 %v872, 1.0
    %v874 = vrcp.pop %v873
    %v875 = vmul.f32 1.0, %v874
    %v876 = vsel %vm322, %v869, %v875
    %v877 = vmul.f32 %v876, %v806
    %879 = vrot.lane.b32.xlu0 %v876, 64
    %v880 = vpop.permute.xlu0 %879
    %v882 = vmul.f32 %v876, %v880
    %884 = vrot.lane.b32.xlu0 %v882, 32
    %v885 = vpop.permute.xlu0 %884
    %v887 = vadd.f32 %v877, %v885
    %v888 = vtanh.pop %v887
    %890 = vrot.lane.b32.xlu0 %v888, 64
    %v891 = vpop.permute.xlu0 %890
    %v893 = vmul.f32 %v876, %v891
    %895 = vrot.lane.b32.xlu0 %v893, 32
    %v896 = vpop.permute.xlu0 %895
    %898 = vst.msk [vmem:[#allocation2 + $0xc] sm:$0x3] %vm410, %v896
    %899 = vst.msk [vmem:[#allocation3] sm:$0xc] %vm412, %v896
    %s900 = scalar_lea.vmem %s7, 28
    %v901 = vld [vmem:[%s900] sm:$0xf]
    %v902 = vpack.c.bf16 %v893, %v893
    %904 = vrot.lane.b32.xlu0 %v902, 32
    %v905 = vpop.permute.xlu0 %904
    %v907 = vsel %vm336, %v905, 0
    %909 = vmatprep.subr.bf16.mxu0 0
    %910 = vmatpush1.bf16.msra.mxu0 %v332
    %911 = vmatprep.subr.bf16.mxu0 0
    %912 = vmatpush1.bf16.msra.mxu0 %v333
    %913 = vmatprep.subr.bf16.mxu0 0
    %914 = vmatpush1.bf16.msra.mxu0 0
    %915 = vmatprep.subr.bf16.mxu0 0
    %916 = vmatpush1.bf16.msra.mxu0 0
    %917 = vmatprep.subr.bf16.mxu0 0
    %918 = vmatpush1.bf16.msra.mxu0 0
    %919 = vmatprep.subr.bf16.mxu0 0
    %920 = vmatpush1.bf16.msra.mxu0 0
    %921 = vmatprep.subr.bf16.mxu0 0
    %922 = vmatpush1.bf16.msra.mxu0 0
    %923 = vmatprep.subr.bf16.mxu0 0
    %924 = vmatpush1.bf16.msra.mxu0 0
    %925 = vmatprep.subr.bf16.mxu0 0
    %926 = vmatpush1.bf16.msra.mxu0 0
    %927 = vmatprep.subr.bf16.mxu0 0
    %928 = vmatpush1.bf16.msra.mxu0 0
    %929 = vmatprep.subr.bf16.mxu0 0
    %930 = vmatpush1.bf16.msra.mxu0 0
    %931 = vmatprep.subr.bf16.mxu0 0
    %932 = vmatpush1.bf16.msra.mxu0 0
    %933 = vmatprep.subr.bf16.mxu0 0
    %934 = vmatpush1.bf16.msra.mxu0 0
    %935 = vmatprep.subr.bf16.mxu0 0
    %936 = vmatpush1.bf16.msra.mxu0 0
    %937 = vmatprep.subr.bf16.mxu0 0
    %938 = vmatpush1.bf16.msra.mxu0 0
    %939 = vmatprep.subr.bf16.mxu0 0
    %940 = vmatpush1.bf16.msra.mxu0 0
    %941 = vmatprep.mubr.bf16.mxu0 0
    %942 = vmatmul.mubr.bf16.gmra.mrb[0].mxu0 %v907
    %v943 = vpop.f32.mrb[0].mxu0
    %v944 = vadd.f32 0.0, %v943
    %v945 = vpop.f32.mrb[0].mxu0
    %v946 = vpop.f32.mrb[0].mxu0
    %v947 = vpop.f32.mrb[0].mxu0
    %948 = vdwg.mxu0
    %v949 = vadd.f32 %v901, %v944
    %v950 = vtanh.pop %v949
    %v951 = vxor.u32 %v949, 2147483648
    %v952 = vmul.f32 %v951, 1.442695
    %v953 = vpow.pop %v952
    %v954 = vadd.f32 %v953, 1.0
    %v955 = vrcp.pop %v954
    %v956 = vmul.f32 1.0, %v955
    %v957 = vsel %vm322, %v950, %v956
    %v958 = vmul.f32 %v957, %v887
    %960 = vrot.lane.b32.xlu0 %v957, 64
    %v961 = vpop.permute.xlu0 %960
    %v963 = vmul.f32 %v957, %v961
    %965 = vrot.lane.b32.xlu0 %v963, 32
    %v966 = vpop.permute.xlu0 %965
    %v968 = vadd.f32 %v958, %v966
    %v969 = vtanh.pop %v968
    %971 = vrot.lane.b32.xlu0 %v969, 64
    %v972 = vpop.permute.xlu0 %971
    %v974 = vmul.f32 %v957, %v972
    %976 = vrot.lane.b32.xlu0 %v974, 32
    %v977 = vpop.permute.xlu0 %976
    %979 = vst.msk [vmem:[#allocation2 + $0xe] sm:$0x3] %vm410, %v977
    %980 = vst.msk [vmem:[#allocation3 - $0x2] sm:$0xc] %vm412, %v977
    %v981 = vld [vmem:[%s10] sm:$0xf]
    %v982 = vld [vmem:[%s10 + $0x4] sm:$0xf]
    %v983 = vld [vmem:[%s10 + $0x8] sm:$0xf]
    %v984 = vld [vmem:[%s10 + $0xc] sm:$0xf]
    %985 = vst.msk [vmem:[#allocation4] sm:$0x3] %vm410, %v977
    %v986 = vld [vmem:[%s9] sm:$0x3]
    %v987 = vpack.c.bf16 %v974, %v974
    %989 = vrot.lane.b32.xlu0 %v987, 32
    %v990 = vpop.permute.xlu0 %989
    %v995 = vunpack.c.l.b16 %v981
    %v996 = vunpack.c.l.b16 %v982
    %v997 = vunpack.c.l.b16 %v983
    %v998 = vunpack.c.l.b16 %v984
    %v999 = vpack.c.b16 %v996, %v995
    %v1000 = vpack.c.b16 %v998, %v997
    %v1004 = vsel %vm336, %v990, 0
    %1006 = vmatprep.subr.bf16.mxu0 0
    %1007 = vmatpush1.bf16.msra.mxu0 %v999
    %1008 = vmatprep.subr.bf16.mxu0 0
    %1009 = vmatpush1.bf16.msra.mxu0 %v1000
    %1010 = vmatprep.subr.bf16.mxu0 0
    %1011 = vmatpush1.bf16.msra.mxu0 0
    %1012 = vmatprep.subr.bf16.mxu0 0
    %1013 = vmatpush1.bf16.msra.mxu0 0
    %1014 = vmatprep.subr.bf16.mxu0 0
    %1015 = vmatpush1.bf16.msra.mxu0 0
    %1016 = vmatprep.subr.bf16.mxu0 0
    %1017 = vmatpush1.bf16.msra.mxu0 0
    %1018 = vmatprep.subr.bf16.mxu0 0
    %1019 = vmatpush1.bf16.msra.mxu0 0
    %1020 = vmatprep.subr.bf16.mxu0 0
    %1021 = vmatpush1.bf16.msra.mxu0 0
    %1022 = vmatprep.subr.bf16.mxu0 0
    %1023 = vmatpush1.bf16.msra.mxu0 0
    %1024 = vmatprep.subr.bf16.mxu0 0
    %1025 = vmatpush1.bf16.msra.mxu0 0
    %1026 = vmatprep.subr.bf16.mxu0 0
    %1027 = vmatpush1.bf16.msra.mxu0 0
    %1028 = vmatprep.subr.bf16.mxu0 0
    %1029 = vmatpush1.bf16.msra.mxu0 0
    %1030 = vmatprep.subr.bf16.mxu0 0
    %1031 = vmatpush1.bf16.msra.mxu0 0
    %1032 = vmatprep.subr.bf16.mxu0 0
    %1033 = vmatpush1.bf16.msra.mxu0 0
    %1034 = vmatprep.subr.bf16.mxu0 0
    %1035 = vmatpush1.bf16.msra.mxu0 0
    %1036 = vmatprep.subr.bf16.mxu0 0
    %1037 = vmatpush1.bf16.msra.mxu0 0
    %1038 = vmatprep.mubr.bf16.mxu0 0
    %1039 = vmatmul.mubr.bf16.gmra.mrb[0].mxu0 %v1004
    %v1040 = vpop.f32.mrb[0].mxu0
    %v1041 = vadd.f32 0.0, %v1040
    %v1042 = vpop.f32.mrb[0].mxu0
    %v1043 = vpop.f32.mrb[0].mxu0
    %v1044 = vpop.f32.mrb[0].mxu0
    %1045 = vdwg.mxu0
    %v1046 = vadd.f32 %v986, %v1041
    %v1047 = vtanh.pop %v1046
    %v1048 = vxor.u32 %v1046, 2147483648
    %v1049 = vmul.f32 %v1048, 1.442695
    %v1050 = vpow.pop %v1049
    %v1051 = vadd.f32 %v1050, 1.0
    %v1052 = vrcp.pop %v1051
    %v1053 = vmul.f32 1.0, %v1052
    %v1054 = vsel %vm322, %v1047, %v1053
    %v1055 = vmul.f32 %v1054, %v968
    %1057 = vrot.lane.b32.xlu0 %v1054, 64
    %v1058 = vpop.permute.xlu0 %1057
    %v1060 = vmul.f32 %v1054, %v1058
    %1062 = vrot.lane.b32.xlu0 %v1060, 32
    %v1063 = vpop.permute.xlu0 %1062
    %v1065 = vadd.f32 %v1055, %v1063
    %v1066 = vtanh.pop %v1065
    %1068 = vrot.lane.b32.xlu0 %v1066, 64
    %v1069 = vpop.permute.xlu0 %1068
    %v1071 = vmul.f32 %v1054, %v1069
    %1073 = vrot.lane.b32.xlu0 %v1071, 32
    %v1074 = vpop.permute.xlu0 %1073
    %1076 = vst.msk [vmem:[#allocation4 + $0x2] sm:$0x3] %vm410, %v1074
    %s1077 = scalar_lea.vmem %s9, 2
    %v1078 = vld [vmem:[%s1077] sm:$0x3]
    %v1079 = vpack.c.bf16 %v1071, %v1071
    %1081 = vrot.lane.b32.xlu0 %v1079, 32
    %v1082 = vpop.permute.xlu0 %1081
    %v1084 = vsel %vm336, %v1082, 0
    %1086 = vmatprep.subr.bf16.mxu0 0
    %1087 = vmatpush1.bf16.msra.mxu0 %v999
    %1088 = vmatprep.subr.bf16.mxu0 0
    %1089 = vmatpush1.bf16.msra.mxu0 %v1000
    %1090 = vmatprep.subr.bf16.mxu0 0
    %1091 = vmatpush1.bf16.msra.mxu0 0
    %1092 = vmatprep.subr.bf16.mxu0 0
    %1093 = vmatpush1.bf16.msra.mxu0 0
    %1094 = vmatprep.subr.bf16.mxu0 0
    %1095 = vmatpush1.bf16.msra.mxu0 0
    %1096 = vmatprep.subr.bf16.mxu0 0
    %1097 = vmatpush1.bf16.msra.mxu0 0
    %1098 = vmatprep.subr.bf16.mxu0 0
    %1099 = vmatpush1.bf16.msra.mxu0 0
    %1100 = vmatprep.subr.bf16.mxu0 0
    %1101 = vmatpush1.bf16.msra.mxu0 0
    %1102 = vmatprep.subr.bf16.mxu0 0
    %1103 = vmatpush1.bf16.msra.mxu0 0
    %1104 = vmatprep.subr.bf16.mxu0 0
    %1105 = vmatpush1.bf16.msra.mxu0 0
    %1106 = vmatprep.subr.bf16.mxu0 0
    %1107 = vmatpush1.bf16.msra.mxu0 0
    %1108 = vmatprep.subr.bf16.mxu0 0
    %1109 = vmatpush1.bf16.msra.mxu0 0
    %1110 = vmatprep.subr.bf16.mxu0 0
    %1111 = vmatpush1.bf16.msra.mxu0 0
    %1112 = vmatprep.subr.bf16.mxu0 0
    %1113 = vmatpush1.bf16.msra.mxu0 0
    %1114 = vmatprep.subr.bf16.mxu0 0
    %1115 = vmatpush1.bf16.msra.mxu0 0
    %1116 = vmatprep.subr.bf16.mxu0 0
    %1117 = vmatpush1.bf16.msra.mxu0 0
    %1118 = vmatprep.mubr.bf16.mxu0 0
    %1119 = vmatmul.mubr.bf16.gmra.mrb[0].mxu0 %v1084
    %v1120 = vpop.f32.mrb[0].mxu0
    %v1121 = vadd.f32 0.0, %v1120
    %v1122 = vpop.f32.mrb[0].mxu0
    %v1123 = vpop.f32.mrb[0].mxu0
    %v1124 = vpop.f32.mrb[0].mxu0
    %1125 = vdwg.mxu0
    %v1126 = vadd.f32 %v1078, %v1121
    %v1127 = vtanh.pop %v1126
    %v1128 = vxor.u32 %v1126, 2147483648
    %v1129 = vmul.f32 %v1128, 1.442695
    %v1130 = vpow.pop %v1129
    %v1131 = vadd.f32 %v1130, 1.0
    %v1132 = vrcp.pop %v1131
    %v1133 = vmul.f32 1.0, %v1132
    %v1134 = vsel %vm322, %v1127, %v1133
    %v1135 = vmul.f32 %v1134, %v1065
    %1137 = vrot.lane.b32.xlu0 %v1134, 64
    %v1138 = vpop.permute.xlu0 %1137
    %v1140 = vmul.f32 %v1134, %v1138
    %1142 = vrot.lane.b32.xlu0 %v1140, 32
    %v1143 = vpop.permute.xlu0 %1142
    %v1145 = vadd.f32 %v1135, %v1143
    %v1146 = vtanh.pop %v1145
    %1148 = vrot.lane.b32.xlu0 %v1146, 64
    %v1149 = vpop.permute.xlu0 %1148
    %v1151 = vmul.f32 %v1134, %v1149
    %1153 = vrot.lane.b32.xlu0 %v1151, 32
    %v1154 = vpop.permute.xlu0 %1153
    %1156 = vst.msk [vmem:[#allocation4 + $0x4] sm:$0x3] %vm410, %v1154
    %s1157 = scalar_lea.vmem %s9, 4
    %v1158 = vld [vmem:[%s1157] sm:$0x3]
    %v1159 = vpack.c.bf16 %v1151, %v1151
    %1161 = vrot.lane.b32.xlu0 %v1159, 32
    %v1162 = vpop.permute.xlu0 %1161
    %v1164 = vsel %vm336, %v1162, 0
    %1166 = vmatprep.subr.bf16.mxu0 0
    %1167 = vmatpush1.bf16.msra.mxu0 %v999
    %1168 = vmatprep.subr.bf16.mxu0 0
    %1169 = vmatpush1.bf16.msra.mxu0 %v1000
    %1170 = vmatprep.subr.bf16.mxu0 0
    %1171 = vmatpush1.bf16.msra.mxu0 0
    %1172 = vmatprep.subr.bf16.mxu0 0
    %1173 = vmatpush1.bf16.msra.mxu0 0
    %1174 = vmatprep.subr.bf16.mxu0 0
    %1175 = vmatpush1.bf16.msra.mxu0 0
    %1176 = vmatprep.subr.bf16.mxu0 0
    %1177 = vmatpush1.bf16.msra.mxu0 0
    %1178 = vmatprep.subr.bf16.mxu0 0
    %1179 = vmatpush1.bf16.msra.mxu0 0
    %1180 = vmatprep.subr.bf16.mxu0 0
    %1181 = vmatpush1.bf16.msra.mxu0 0
    %1182 = vmatprep.subr.bf16.mxu0 0
    %1183 = vmatpush1.bf16.msra.mxu0 0
    %1184 = vmatprep.subr.bf16.mxu0 0
    %1185 = vmatpush1.bf16.msra.mxu0 0
    %1186 = vmatprep.subr.bf16.mxu0 0
    %1187 = vmatpush1.bf16.msra.mxu0 0
    %1188 = vmatprep.subr.bf16.mxu0 0
    %1189 = vmatpush1.bf16.msra.mxu0 0
    %1190 = vmatprep.subr.bf16.mxu0 0
    %1191 = vmatpush1.bf16.msra.mxu0 0
    %1192 = vmatprep.subr.bf16.mxu0 0
    %1193 = vmatpush1.bf16.msra.mxu0 0
    %1194 = vmatprep.subr.bf16.mxu0 0
    %1195 = vmatpush1.bf16.msra.mxu0 0
    %1196 = vmatprep.subr.bf16.mxu0 0
    %1197 = vmatpush1.bf16.msra.mxu0 0
    %1198 = vmatprep.mubr.bf16.mxu0 0
    %1199 = vmatmul.mubr.bf16.gmra.mrb[0].mxu0 %v1164
    %v1200 = vpop.f32.mrb[0].mxu0
    %v1201 = vadd.f32 0.0, %v1200
    %v1202 = vpop.f32.mrb[0].mxu0
    %v1203 = vpop.f32.mrb[0].mxu0
    %v1204 = vpop.f32.mrb[0].mxu0
    %1205 = vdwg.mxu0
    %v1206 = vadd.f32 %v1158, %v1201
    %v1207 = vtanh.pop %v1206
    %v1208 = vxor.u32 %v1206, 2147483648
    %v1209 = vmul.f32 %v1208, 1.442695
    %v1210 = vpow.pop %v1209
    %v1211 = vadd.f32 %v1210, 1.0
    %v1212 = vrcp.pop %v1211
    %v1213 = vmul.f32 1.0, %v1212
    %v1214 = vsel %vm322, %v1207, %v1213
    %v1215 = vmul.f32 %v1214, %v1145
    %1217 = vrot.lane.b32.xlu0 %v1214, 64
    %v1218 = vpop.permute.xlu0 %1217
    %v1220 = vmul.f32 %v1214, %v1218
    %1222 = vrot.lane.b32.xlu0 %v1220, 32
    %v1223 = vpop.permute.xlu0 %1222
    %v1225 = vadd.f32 %v1215, %v1223
    %v1226 = vtanh.pop %v1225
    %1228 = vrot.lane.b32.xlu0 %v1226, 64
    %v1229 = vpop.permute.xlu0 %1228
    %v1231 = vmul.f32 %v1214, %v1229
    %1233 = vrot.lane.b32.xlu0 %v1231, 32
    %v1234 = vpop.permute.xlu0 %1233
    %1236 = vst.msk [vmem:[#allocation4 + $0x6] sm:$0x3] %vm410, %v1234
    %s1237 = scalar_lea.vmem %s9, 6
    %v1238 = vld [vmem:[%s1237] sm:$0x3]
    %v1239 = vpack.c.bf16 %v1231, %v1231
    %1241 = vrot.lane.b32.xlu0 %v1239, 32
    %v1242 = vpop.permute.xlu0 %1241
    %v1244 = vsel %vm336, %v1242, 0
    %1246 = vmatprep.subr.bf16.mxu0 0
    %1247 = vmatpush1.bf16.msra.mxu0 %v999
    %1248 = vmatprep.subr.bf16.mxu0 0
    %1249 = vmatpush1.bf16.msra.mxu0 %v1000
    %1250 = vmatprep.subr.bf16.mxu0 0
    %1251 = vmatpush1.bf16.msra.mxu0 0
    %1252 = vmatprep.subr.bf16.mxu0 0
    %1253 = vmatpush1.bf16.msra.mxu0 0
    %1254 = vmatprep.subr.bf16.mxu0 0
    %1255 = vmatpush1.bf16.msra.mxu0 0
    %1256 = vmatprep.subr.bf16.mxu0 0
    %1257 = vmatpush1.bf16.msra.mxu0 0
    %1258 = vmatprep.subr.bf16.mxu0 0
    %1259 = vmatpush1.bf16.msra.mxu0 0
    %1260 = vmatprep.subr.bf16.mxu0 0
    %1261 = vmatpush1.bf16.msra.mxu0 0
    %1262 = vmatprep.subr.bf16.mxu0 0
    %1263 = vmatpush1.bf16.msra.mxu0 0
    %1264 = vmatprep.subr.bf16.mxu0 0
    %1265 = vmatpush1.bf16.msra.mxu0 0
    %1266 = vmatprep.subr.bf16.mxu0 0
    %1267 = vmatpush1.bf16.msra.mxu0 0
    %1268 = vmatprep.subr.bf16.mxu0 0
    %1269 = vmatpush1.bf16.msra.mxu0 0
    %1270 = vmatprep.subr.bf16.mxu0 0
    %1271 = vmatpush1.bf16.msra.mxu0 0
    %1272 = vmatprep.subr.bf16.mxu0 0
    %1273 = vmatpush1.bf16.msra.mxu0 0
    %1274 = vmatprep.subr.bf16.mxu0 0
    %1275 = vmatpush1.bf16.msra.mxu0 0
    %1276 = vmatprep.subr.bf16.mxu0 0
    %1277 = vmatpush1.bf16.msra.mxu0 0
    %1278 = vmatprep.mubr.bf16.mxu0 0
    %1279 = vmatmul.mubr.bf16.gmra.mrb[0].mxu0 %v1244
    %v1280 = vpop.f32.mrb[0].mxu0
    %v1281 = vadd.f32 0.0, %v1280
    %v1282 = vpop.f32.mrb[0].mxu0
    %v1283 = vpop.f32.mrb[0].mxu0
    %v1284 = vpop.f32.mrb[0].mxu0
    %1285 = vdwg.mxu0
    %v1286 = vadd.f32 %v1238, %v1281
    %v1287 = vtanh.pop %v1286
    %v1288 = vxor.u32 %v1286, 2147483648
    %v1289 = vmul.f32 %v1288, 1.442695
    %v1290 = vpow.pop %v1289
    %v1291 = vadd.f32 %v1290, 1.0
    %v1292 = vrcp.pop %v1291
    %v1293 = vmul.f32 1.0, %v1292
    %v1294 = vsel %vm322, %v1287, %v1293
    %v1295 = vmul.f32 %v1294, %v1225
    %1297 = vrot.lane.b32.xlu0 %v1294, 64
    %v1298 = vpop.permute.xlu0 %1297
    %v1300 = vmul.f32 %v1294, %v1298
    %1302 = vrot.lane.b32.xlu0 %v1300, 32
    %v1303 = vpop.permute.xlu0 %1302
    %v1305 = vadd.f32 %v1295, %v1303
    %v1306 = vtanh.pop %v1305
    %1308 = vrot.lane.b32.xlu0 %v1306, 64
    %v1309 = vpop.permute.xlu0 %1308
    %v1311 = vmul.f32 %v1294, %v1309
    %1313 = vrot.lane.b32.xlu0 %v1311, 32
    %v1314 = vpop.permute.xlu0 %1313
    %1316 = vst.msk [vmem:[#allocation4 + $0x8] sm:$0x3] %vm410, %v1314
    %s1317 = scalar_lea.vmem %s9, 8
    %v1318 = vld [vmem:[%s1317] sm:$0x3]
    %v1319 = vpack.c.bf16 %v1311, %v1311
    %1321 = vrot.lane.b32.xlu0 %v1319, 32
    %v1322 = vpop.permute.xlu0 %1321
    %v1324 = vsel %vm336, %v1322, 0
    %1326 = vmatprep.subr.bf16.mxu0 0
    %1327 = vmatpush1.bf16.msra.mxu0 %v999
    %1328 = vmatprep.subr.bf16.mxu0 0
    %1329 = vmatpush1.bf16.msra.mxu0 %v1000
    %1330 = vmatprep.subr.bf16.mxu0 0
    %1331 = vmatpush1.bf16.msra.mxu0 0
    %1332 = vmatprep.subr.bf16.mxu0 0
    %1333 = vmatpush1.bf16.msra.mxu0 0
    %1334 = vmatprep.subr.bf16.mxu0 0
    %1335 = vmatpush1.bf16.msra.mxu0 0
    %1336 = vmatprep.subr.bf16.mxu0 0
    %1337 = vmatpush1.bf16.msra.mxu0 0
    %1338 = vmatprep.subr.bf16.mxu0 0
    %1339 = vmatpush1.bf16.msra.mxu0 0
    %1340 = vmatprep.subr.bf16.mxu0 0
    %1341 = vmatpush1.bf16.msra.mxu0 0
    %1342 = vmatprep.subr.bf16.mxu0 0
    %1343 = vmatpush1.bf16.msra.mxu0 0
    %1344 = vmatprep.subr.bf16.mxu0 0
    %1345 = vmatpush1.bf16.msra.mxu0 0
    %1346 = vmatprep.subr.bf16.mxu0 0
    %1347 = vmatpush1.bf16.msra.mxu0 0
    %1348 = vmatprep.subr.bf16.mxu0 0
    %1349 = vmatpush1.bf16.msra.mxu0 0
    %1350 = vmatprep.subr.bf16.mxu0 0
    %1351 = vmatpush1.bf16.msra.mxu0 0
    %1352 = vmatprep.subr.bf16.mxu0 0
    %1353 = vmatpush1.bf16.msra.mxu0 0
    %1354 = vmatprep.subr.bf16.mxu0 0
    %1355 = vmatpush1.bf16.msra.mxu0 0
    %1356 = vmatprep.subr.bf16.mxu0 0
    %1357 = vmatpush1.bf16.msra.mxu0 0
    %1358 = vmatprep.mubr.bf16.mxu0 0
    %1359 = vmatmul.mubr.bf16.gmra.mrb[0].mxu0 %v1324
    %v1360 = vpop.f32.mrb[0].mxu0
    %v1361 = vadd.f32 0.0, %v1360
    %v1362 = vpop.f32.mrb[0].mxu0
    %v1363 = vpop.f32.mrb[0].mxu0
    %v1364 = vpop.f32.mrb[0].mxu0
    %1365 = vdwg.mxu0
    %v1366 = vadd.f32 %v1318, %v1361
    %v1367 = vtanh.pop %v1366
    %v1368 = vxor.u32 %v1366, 2147483648
    %v1369 = vmul.f32 %v1368, 1.442695
    %v1370 = vpow.pop %v1369
    %v1371 = vadd.f32 %v1370, 1.0
    %v1372 = vrcp.pop %v1371
    %v1373 = vmul.f32 1.0, %v1372
    %v1374 = vsel %vm322, %v1367, %v1373
    %v1375 = vmul.f32 %v1374, %v1305
    %1377 = vrot.lane.b32.xlu0 %v1374, 64
    %v1378 = vpop.permute.xlu0 %1377
    %v1380 = vmul.f32 %v1374, %v1378
    %1382 = vrot.lane.b32.xlu0 %v1380, 32
    %v1383 = vpop.permute.xlu0 %1382
    %v1385 = vadd.f32 %v1375, %v1383
    %v1386 = vtanh.pop %v1385
    %1388 = vrot.lane.b32.xlu0 %v1386, 64
    %v1389 = vpop.permute.xlu0 %1388
    %v1391 = vmul.f32 %v1374, %v1389
    %1393 = vrot.lane.b32.xlu0 %v1391, 32
    %v1394 = vpop.permute.xlu0 %1393
    %1396 = vst.msk [vmem:[#allocation4 + $0xa] sm:$0x3] %vm410, %v1394
    %v1397 = vld [vmem:[#allocation2] sm:$0xff]
    %v1398 = vld [vmem:[#allocation2 + $0x8] sm:$0xff]
    %v1399 = vpack.c.bf16 %v1398, %v1397
    %v1400 = vld [vmem:[#allocation3] sm:$0xff]
    %v1401 = vld [vmem:[#allocation3 + $0x8] sm:$0xff]
    %v1402 = vpack.c.bf16 %v1401, %v1400
    %v1403 = vld [vmem:[#allocation4] sm:$0xff]
    %v1404 = vld [vmem:[#allocation4 + $0x8] sm:$0xf]
    %v1405 = vpack.c.bf16 %v1404, %v1403
    %v1406 = vld [vmem:[%s11] sm:$0xf]
    %v1407 = vld [vmem:[%s11 + $0x4] sm:$0xf]
    %v1408 = vld [vmem:[%s11 + $0x8] sm:$0xf]
    %v1409 = vld [vmem:[%s11 + $0xc] sm:$0xf]
    %v1410 = vld [vmem:[%s12] sm:$0xf]
    %v1411 = vld [vmem:[%s12 + $0x4] sm:$0xf]
    %v1412 = vld [vmem:[%s12 + $0x8] sm:$0xf]
    %v1413 = vld [vmem:[%s12 + $0xc] sm:$0xf]
    %v1418 = vunpack.c.l.b16 %v1410
    %v1419 = vunpack.c.l.b16 %v1411
    %v1420 = vunpack.c.l.b16 %v1412
    %v1421 = vunpack.c.l.b16 %v1413
    %v1422 = vpack.c.b16 %v1419, %v1418
    %v1423 = vpack.c.b16 %v1421, %v1420
    %v1427 = vsel %vm336, %v1402, 0
    %1429 = vmatprep.subr.bf16.mxu0 0
    %1430 = vmatpush1.bf16.msra.mxu0 %v1422
    %1431 = vmatprep.subr.bf16.mxu0 0
    %1432 = vmatpush1.bf16.msra.mxu0 %v1423
    %1433 = vmatprep.subr.bf16.mxu0 0
    %1434 = vmatpush1.bf16.msra.mxu0 0
    %1435 = vmatprep.subr.bf16.mxu0 0
    %1436 = vmatpush1.bf16.msra.mxu0 0
    %1437 = vmatprep.subr.bf16.mxu0 0
    %1438 = vmatpush1.bf16.msra.mxu0 0
    %1439 = vmatprep.subr.bf16.mxu0 0
    %1440 = vmatpush1.bf16.msra.mxu0 0
    %1441 = vmatprep.subr.bf16.mxu0 0
    %1442 = vmatpush1.bf16.msra.mxu0 0
    %1443 = vmatprep.subr.bf16.mxu0 0
    %1444 = vmatpush1.bf16.msra.mxu0 0
    %1445 = vmatprep.subr.bf16.mxu0 0
    %1446 = vmatpush1.bf16.msra.mxu0 0
    %1447 = vmatprep.subr.bf16.mxu0 0
    %1448 = vmatpush1.bf16.msra.mxu0 0
    %1449 = vmatprep.subr.bf16.mxu0 0
    %1450 = vmatpush1.bf16.msra.mxu0 0
    %1451 = vmatprep.subr.bf16.mxu0 0
    %1452 = vmatpush1.bf16.msra.mxu0 0
    %1453 = vmatprep.subr.bf16.mxu0 0
    %1454 = vmatpush1.bf16.msra.mxu0 0
    %1455 = vmatprep.subr.bf16.mxu0 0
    %1456 = vmatpush1.bf16.msra.mxu0 0
    %1457 = vmatprep.subr.bf16.mxu0 0
    %1458 = vmatpush1.bf16.msra.mxu0 0
    %1459 = vmatprep.subr.bf16.mxu0 0
    %1460 = vmatpush1.bf16.msra.mxu0 0
    %1461 = vmatprep.mubr.bf16.mxu0 0
    %1462 = vmatmul.mubr.bf16.gmra.mrb[0].mxu0 %v1427
    %v1463 = vpop.f32.mrb[0].mxu0
    %v1464 = vadd.f32 0.0, %v1463
    %v1465 = vpop.f32.mrb[0].mxu0
    %v1466 = vpop.f32.mrb[0].mxu0
    %v1467 = vadd.f32 0.0, %v1466
    %v1468 = vpop.f32.mrb[0].mxu0
    %1469 = vdwg.mxu0
    %v1474 = vunpack.c.l.b16 %v1406
    %v1475 = vunpack.c.l.b16 %v1407
    %v1476 = vunpack.c.l.b16 %v1408
    %v1477 = vunpack.c.l.b16 %v1409
    %v1478 = vpack.c.b16 %v1475, %v1474
    %v1479 = vpack.c.b16 %v1477, %v1476
    %v1483 = vsel %vm336, %v1399, 0
    %1485 = vmatprep.subr.bf16.mxu0 0
    %1486 = vmatpush1.bf16.msra.mxu0 %v1478
    %1487 = vmatprep.subr.bf16.mxu0 0
    %1488 = vmatpush1.bf16.msra.mxu0 %v1479
    %1489 = vmatprep.subr.bf16.mxu0 0
    %1490 = vmatpush1.bf16.msra.mxu0 0
    %1491 = vmatprep.subr.bf16.mxu0 0
    %1492 = vmatpush1.bf16.msra.mxu0 0
    %1493 = vmatprep.subr.bf16.mxu0 0
    %1494 = vmatpush1.bf16.msra.mxu0 0
    %1495 = vmatprep.subr.bf16.mxu0 0
    %1496 = vmatpush1.bf16.msra.mxu0 0
    %1497 = vmatprep.subr.bf16.mxu0 0
    %1498 = vmatpush1.bf16.msra.mxu0 0
    %1499 = vmatprep.subr.bf16.mxu0 0
    %1500 = vmatpush1.bf16.msra.mxu0 0
    %1501 = vmatprep.subr.bf16.mxu0 0
    %1502 = vmatpush1.bf16.msra.mxu0 0
    %1503 = vmatprep.subr.bf16.mxu0 0
    %1504 = vmatpush1.bf16.msra.mxu0 0
    %1505 = vmatprep.subr.bf16.mxu0 0
    %1506 = vmatpush1.bf16.msra.mxu0 0
    %1507 = vmatprep.subr.bf16.mxu0 0
    %1508 = vmatpush1.bf16.msra.mxu0 0
    %1509 = vmatprep.subr.bf16.mxu0 0
    %1510 = vmatpush1.bf16.msra.mxu0 0
    %1511 = vmatprep.subr.bf16.mxu0 0
    %1512 = vmatpush1.bf16.msra.mxu0 0
    %1513 = vmatprep.subr.bf16.mxu0 0
    %1514 = vmatpush1.bf16.msra.mxu0 0
    %1515 = vmatprep.subr.bf16.mxu0 0
    %1516 = vmatpush1.bf16.msra.mxu0 0
    %1517 = vmatprep.mubr.bf16.mxu0 0
    %1518 = vmatmul.mubr.bf16.gmra.mrb[0].mxu0 %v1483
    %v1519 = vpop.f32.mrb[0].mxu0
    %v1520 = vadd.f32 %v1464, %v1519
    %v1521 = vpop.f32.mrb[0].mxu0
    %v1522 = vpop.f32.mrb[0].mxu0
    %v1523 = vadd.f32 %v1467, %v1522
    %v1524 = vpop.f32.mrb[0].mxu0
    %1525 = vdwg.mxu0
    %v1526 = vpack.c.bf16 %v1523, %v1520
    %v1528 = vsel %vm336, %v1526, 0
    %v1531 = vsel %vm336, %v1405, 0
    %1533 = vmatprep.subr.bf16.mxu0 0
    %1534 = vmatpush1.bf16.xpose.msra.mxu0 %v1531
    %1535 = vmatprep.subr.bf16.mxu0 0
    %1536 = vmatpush1.bf16.xpose.msra.mxu0 0
    %1537 = vmatprep.subr.bf16.mxu0 0
    %1538 = vmatpush1.bf16.xpose.msra.mxu0 0
    %1539 = vmatprep.subr.bf16.mxu0 0
    %1540 = vmatpush1.bf16.xpose.msra.mxu0 0
    %1541 = vmatprep.subr.bf16.mxu0 0
    %1542 = vmatpush1.bf16.xpose.msra.mxu0 0
    %1543 = vmatprep.subr.bf16.mxu0 0
    %1544 = vmatpush1.bf16.xpose.msra.mxu0 0
    %1545 = vmatprep.subr.bf16.mxu0 0
    %1546 = vmatpush1.bf16.xpose.msra.mxu0 0
    %1547 = vmatprep.subr.bf16.mxu0 0
    %1548 = vmatpush1.bf16.xpose.msra.mxu0 0
    %1549 = vmatprep.subr.bf16.mxu0 0
    %1550 = vmatpush1.bf16.xpose.msra.mxu0 0
    %1551 = vmatprep.subr.bf16.mxu0 0
    %1552 = vmatpush1.bf16.xpose.msra.mxu0 0
    %1553 = vmatprep.subr.bf16.mxu0 0
    %1554 = vmatpush1.bf16.xpose.msra.mxu0 0
    %1555 = vmatprep.subr.bf16.mxu0 0
    %1556 = vmatpush1.bf16.xpose.msra.mxu0 0
    %1557 = vmatprep.subr.bf16.mxu0 0
    %1558 = vmatpush1.bf16.xpose.msra.mxu0 0
    %1559 = vmatprep.subr.bf16.mxu0 0
    %1560 = vmatpush1.bf16.xpose.msra.mxu0 0
    %1561 = vmatprep.subr.bf16.mxu0 0
    %1562 = vmatpush1.bf16.xpose.msra.mxu0 0
    %1563 = vmatprep.subr.bf16.mxu0 0
    %1564 = vmatpush1.bf16.xpose.msra.mxu0 0
    %1565 = vmatprep.mubr.bf16.mxu0 0
    %1566 = vmatmul.mubr.bf16.gmra.mrb[0].mxu0 %v1528
    %v1567 = vpop.f32.mrb[0].mxu0
    %v1568 = vadd.f32 0.0, %v1567
    %v1569 = vpop.f32.mrb[0].mxu0
    %v1570 = vpop.f32.mrb[0].mxu0
    %v1571 = vadd.f32 0.0, %v1570
    %v1572 = vpop.f32.mrb[0].mxu0
    %1573 = vdwg.mxu0
    %v1574 = vld [vmem:[%s2] sm:$0xff]
    %v1575 = vld [vmem:[%s2 + $0x8] sm:$0xff]
    %vm1576 = vcmp.gt.f32.partialorder %v1574, 0.5
    %vm1577 = vcmp.gt.f32.partialorder %v1575, 0.5
    %v1578 = vsel %vm1576, %v1568, -1e+30
    %v1579 = vsel %vm1577, %v1571, -1e+30
    %v1580 = vsel %vm291, %v1578, -inf
    %v1581 = vsel %vm291, %v1579, -inf
    %v1582 = vmax.f32 %v1580, %v1581
    %v1583 = vrot.slane %v1582, 4
    %v1584 = vmax.f32 %v1582, %v1583
    %v1585 = vrot.slane %v1584, 2
    %v1586 = vmax.f32 %v1584, %v1585
    %v1587 = vrot.slane %v1586, 1
    %v1588 = vmax.f32 %v1586, %v1587
    %v1589 = vsub.f32 %v1578, %v1588
    %v1590 = vsub.f32 %v1579, %v1588
    %v1591 = vmul.f32 %v1589, 1.442695
    %v1592 = vpow.pop %v1591
    %v1593 = vmul.f32 %v1590, 1.442695
    %v1594 = vpow.pop %v1593
    %v1595 = vsel %vm291, %v1592, 0.0
    %v1596 = vsel %vm291, %v1594, 0.0
    %v1597 = vadd.f32 %v1595, %v1596
    %v1598 = vrot.slane %v1597, 4
    %v1599 = vadd.f32 %v1597, %v1598
    %v1600 = vrot.slane %v1599, 2
    %v1601 = vadd.f32 %v1599, %v1600
    %v1602 = vrot.slane %v1601, 1
    %v1603 = vadd.f32 %v1601, %v1602
    %v1604 = vrcp.pop %v1603
    %v1605 = vmul.f32 %v1592, %v1604
    %v1606 = vmul.f32 %v1594, %v1604
    %v1607 = vpack.c.bf16 %v313, %v312
    %v1608 = vld [vmem:[%s1] sm:$0xf]
    %v1609 = vld [vmem:[%s1 + $0x4] sm:$0x3]
    %v1612 = vunpack.c.l.b16 %v1608
    %v1613 = vunpack.c.l.b16 %v1609
    %v1614 = vpack.c.b16 %v1613, %v1612
    %v1616 = vsel %vm291, %v1607, 0
    %vm1618 = vcmask 1045504
    %v1620 = vsel %vm1618, %v1614, 0
    %1622 = vmatprep.subr.bf16.mxu0 0
    %1623 = vmatpush1.bf16.msra.mxu0 %v1620
    %1624 = vmatprep.subr.bf16.mxu0 0
    %1625 = vmatpush1.bf16.msra.mxu0 0
    %1626 = vmatprep.subr.bf16.mxu0 0
    %1627 = vmatpush1.bf16.msra.mxu0 0
    %1628 = vmatprep.subr.bf16.mxu0 0
    %1629 = vmatpush1.bf16.msra.mxu0 0
    %1630 = vmatprep.subr.bf16.mxu0 0
    %1631 = vmatpush1.bf16.msra.mxu0 0
    %1632 = vmatprep.subr.bf16.mxu0 0
    %1633 = vmatpush1.bf16.msra.mxu0 0
    %1634 = vmatprep.subr.bf16.mxu0 0
    %1635 = vmatpush1.bf16.msra.mxu0 0
    %1636 = vmatprep.subr.bf16.mxu0 0
    %1637 = vmatpush1.bf16.msra.mxu0 0
    %1638 = vmatprep.subr.bf16.mxu0 0
    %1639 = vmatpush1.bf16.msra.mxu0 0
    %1640 = vmatprep.subr.bf16.mxu0 0
    %1641 = vmatpush1.bf16.msra.mxu0 0
    %1642 = vmatprep.subr.bf16.mxu0 0
    %1643 = vmatpush1.bf16.msra.mxu0 0
    %1644 = vmatprep.subr.bf16.mxu0 0
    %1645 = vmatpush1.bf16.msra.mxu0 0
    %1646 = vmatprep.subr.bf16.mxu0 0
    %1647 = vmatpush1.bf16.msra.mxu0 0
    %1648 = vmatprep.subr.bf16.mxu0 0
    %1649 = vmatpush1.bf16.msra.mxu0 0
    %1650 = vmatprep.subr.bf16.mxu0 0
    %1651 = vmatpush1.bf16.msra.mxu0 0
    %1652 = vmatprep.subr.bf16.mxu0 0
    %1653 = vmatpush1.bf16.msra.mxu0 0
    %1654 = vmatprep.mubr.bf16.mxu0 0
    %1655 = vmatmul.mubr.bf16.gmra.mrb[0].mxu0 %v1616
    %v1656 = vpop.f32.mrb[0].mxu0
    %v1657 = vadd.f32 0.0, %v1656
    %v1658 = vpop.f32.mrb[0].mxu0
    %v1659 = vpop.f32.mrb[0].mxu0
    %v1660 = vadd.f32 0.0, %v1659
    %v1661 = vpop.f32.mrb[0].mxu0
    %1662 = vdwg.mxu0
    %v1663 = vmul.f32 %v1657, %v1605
    %v1664 = vmul.f32 %v1660, %v1606
    %v1665 = vsel %vm291, %v1663, 0.0
    %v1666 = vsel %vm291, %v1664, 0.0
    %v1667 = vadd.f32 %v1665, %v1666
    %v1668 = vrot.slane %v1667, 4
    %v1669 = vadd.f32 %v1667, %v1668
    %v1670 = vrot.slane %v1669, 2
    %v1671 = vadd.f32 %v1669, %v1670
    %v1672 = vrot.slane %v1671, 1
    %v1673 = vadd.f32 %v1671, %v1672
    %v1674 = vlog2.pop %v1673
    %v1675 = vmul.f32 %v1674, 0.6931472
    %vm1676 = vcmask 90112
    %v1677 = vsel %vm1676, %v1675, 0.0
    %1678 = vadd.xlane.f32.xlu0 %v1677
    %v1679 = vpop.xlane.xlu0 %1678
    %v1680 = vrot.slane %v1679, 4
    %v1681 = vadd.f32 %v1679, %v1680
    %v1682 = vrot.slane %v1681, 2
    %v1683 = vadd.f32 %v1681, %v1682
    %v1684 = vrot.slane %v1683, 1
    %v1685 = vadd.f32 %v1683, %v1684
    %s1686 = vtos %v1685
    %s1687 = ssub.f32 0.0, %s1686
    %v1688 = vstv %s1687
    %vm1689 = vcmask 0
    %1690 = vst.msk [vmem:[#allocation5] sm:$0x1] %vm1689, %v1688
    // Predicated region
    $region54: #{forward.1} parent=1 // pred_check
      _
    $region55: #{forward.1} parent=1 // pred_check_branch
      %1692 = sbr.rel (0) target = $region57
    $region56: #{forward.1} parent=1 // pred_region
      %s1694 = ssub.s32 16, 16
      %1695 = vsyncadd [#allocation6], %s1694
      %s1697 = sshll.u32 [#allocation5], 4
      %s1698 = int_to_ptr.vmem [resolvable:$true] %s1697
      %1700 = dma.vmem_to_hbm [thread:$0]  %s1698, 16, %s13, [#allocation6]
    $region57: #{forward.1} parent=1 // pred_fallthru
      _
    // Predicated region
    $region58: #{forward.1} parent=1 // pred_check
      _
    $region59: #{forward.1} parent=1 // pred_check_branch
      %1702 = sbr.rel (0) target = $region61
    $region60: #{forward.1} parent=1 // pred_region
      %1703 = dma.done [#allocation6], 16
    $region61: #{forward.1} parent=1 // pred_fallthru
      _
    %1704 = vsyncpa [#allocation6], 1

</llo_original>
